<compile_context>
chip_gen: v7x
topology: tpu7x:2x2x1
jax: 0.10.0
libtpu: 0.0.40
codegen_flags: <defaults>
</compile_context>

<pallas_src>
import functools
import math

import jax
import jax.numpy as jnp
from jax import lax
from jax.experimental import pallas as pl
from jax.experimental.pallas import tpu as pltpu

EPS = 1e-5
_INV_SQRT2 = 1.0 / math.sqrt(2.0)


def _gelu(x):
    # exact GELU (matches torch.nn.GELU() / F.gelu default)
    return 0.5 * x * (1.0 + lax.erf(x * _INV_SQRT2))


def _groupnorm1(acc, g, b):
    """GroupNorm(num_groups=1) over one sample's (C, H*W) slab; two-pass mean/var."""
    inv_cnt = 1.0 / float(acc.shape[0] * acc.shape[1])
    mean = jnp.sum(acc) * inv_cnt
    xc = acc - mean
    var = jnp.sum(xc * xc) * inv_cnt
    return xc * lax.rsqrt(var + EPS) * g + b


def _conv3x3(x, w_taps, H, W, mask_l, mask_r):
    """3x3 same-padding conv on channel-major data.

    x:       (Cin, H*W) f32, lane-dense
    w_taps:  list of 9 (Cout, Cin) f32 tap matrices, t = dy*3 + dx
    returns: (Cout, H*W) f32

    Shifted taps are static lane slices of a once-padded flat row
    (xp[:, m+delta : m+delta+HW] == x[:, p+delta] with zero fill outside [0, H*W)),
    plus a column-edge mask for the dx = 0 / dx = 2 taps (row edges are already
    handled by the zero fill).  All shifts go to the XLU, masks to the VPU, and the
    9 small matmuls to the (otherwise idle) MXU — no scratch, no masked stores.
    """
    hw = H * W
    c = x.shape[0]
    m = W + 1
    zpad = jnp.zeros((c, m), x.dtype)
    xp = jnp.concatenate([zpad, x, zpad], axis=1)          # (C, H*W + 2W + 2)

    acc = None
    for dy in range(3):
        for dx in range(3):
            t = dy * 3 + dx
            delta = (dy - 1) * W + (dx - 1)
            if delta == 0:
                s = x                                       # center tap: no shift
            else:
                s = xp[:, m + delta:m + delta + hw]         # static lane-offset slice
            if dx == 0:
                s = jnp.where(mask_l, s, 0.0)               # no left neighbor at col 0
            elif dx == 2:
                s = jnp.where(mask_r, s, 0.0)               # no right neighbor at col W-1
            tap = jnp.dot(w_taps[t], s, preferred_element_type=jnp.float32)
            acc = tap if acc is None else acc + tap
    return acc


def _double_conv_kernel(x_ref, w1_ref, g1_ref, b1_ref, w2_ref, g2_ref, b2_ref,
                        out_ref, *, H, W, B, residual):
    """Fused DoubleConv for B batch elements (B unrolled; GroupNorm is per-sample).

    x_ref:   (B, Cin, H*W)      channel-major, lane-dense input tile
    w1_ref:  (9, Cmid, Cin)     conv1 tap matrices
    w2_ref:  (9, Cout, Cmid)    conv2 tap matrices
    g*/b*:   (C, 1)             GroupNorm affine params (broadcast over lanes)
    out_ref: (B, Cout, H*W)     lane-dense output tile
    """
    hw = H * W
    # Column-edge masks, hoisted out of the per-sample / per-tap loops.
    col = lax.broadcasted_iota(jnp.int32, (1, hw), 1) % W
    mask_l = col >= 1
    mask_r = col <= W - 2

    # Tiny tap weights / affine params loaded once, held in vregs.
    w1 = [w1_ref[t].astype(jnp.float32) for t in range(9)]
    w2 = [w2_ref[t].astype(jnp.float32) for t in range(9)]
    g1 = g1_ref[...].astype(jnp.float32)
    b1 = b1_ref[...].astype(jnp.float32)
    g2 = g2_ref[...].astype(jnp.float32)
    b2 = b2_ref[...].astype(jnp.float32)

    for b in range(B):                                      # unrolled, B is small
        x = x_ref[b].astype(jnp.float32)                    # (Cin, H*W)
        # stage 1: conv3x3 -> GN(1) -> GELU (intermediate stays in vregs/VMEM)
        h = _gelu(_groupnorm1(_conv3x3(x, w1, H, W, mask_l, mask_r), g1, b1))
        # stage 2: conv3x3 -> GN(1) [-> +x -> GELU]
        y = _groupnorm1(_conv3x3(h, w2, H, W, mask_l, mask_r), g2, b2)
        if residual:                                        # requires Cin == Cout
            y = _gelu(x + y)
        out_ref[b] = y.astype(out_ref.dtype)                # 256-lane dense store


def double_conv(x_nchw, params, residual=False, samples_per_step=1):
    """Pallas DoubleConv forward. x_nchw: (N, Cin, H, W) -> (N, Cout, H, W)."""
    N, Cin, H, W = x_nchw.shape
    hw = H * W
    w1 = params["w1"].astype(jnp.float32)   # (3,3,Cin,Cmid)  HWIO
    w2 = params["w2"].astype(jnp.float32)   # (3,3,Cmid,Cout) HWIO
    Cmid = w1.shape[-1]
    Cout = w2.shape[-1]
    if residual and Cin != Cout:
        raise ValueError("residual=True requires in_channels == out_channels")
    if N % samples_per_step != 0:
        samples_per_step = 1
    B = samples_per_step

    # NCHW -> (N, Cin, H*W): contiguous flatten, metadata-only (no HBM pass).
    x2d = x_nchw.reshape(N, Cin, hw).astype(jnp.float32)

    # Tap-major weights (9, Cout, Cin); tiny tensors, negligible prep cost.
    w1t = jnp.transpose(w1, (0, 1, 3, 2)).reshape(9, Cmid, Cin)
    w2t = jnp.transpose(w2, (0, 1, 3, 2)).reshape(9, Cout, Cmid)
    g1 = params["g1"].reshape(Cmid, 1).astype(jnp.float32)
    b1 = params["b1"].reshape(Cmid, 1).astype(jnp.float32)
    g2 = params["g2"].reshape(Cout, 1).astype(jnp.float32)
    b2 = params["b2"].reshape(Cout, 1).astype(jnp.float32)

    kernel = functools.partial(_double_conv_kernel, H=H, W=W, B=B, residual=residual)

    # NOTE: per grid step this needs only O((H*W)*(Cin+Cmid+Cout)) f32 of live data
    # (no slabs / padded scratch), so it fits comfortably on v5e/v6e/v7x at these
    # shapes.  For production UNet resolutions, raise samples_per_step (v5e/v6e) or
    # add an H row-strip grid axis with a two-pass cross-strip GroupNorm, and set
    # pltpu.CompilerParams(vmem_limit_bytes=...) when blocks approach the 16/32 MiB
    # default scoped limits.
    y = pl.pallas_call(
        kernel,
        out_shape=jax.ShapeDtypeStruct((N, Cout, hw), jnp.float32),
        grid=(N // B,),
        in_specs=[
            pl.BlockSpec((B, Cin, hw), lambda n: (n, 0, 0)),
            pl.BlockSpec((9, Cmid, Cin), lambda n: (0, 0, 0)),
            pl.BlockSpec((Cmid, 1), lambda n: (0, 0)),
            pl.BlockSpec((Cmid, 1), lambda n: (0, 0)),
            pl.BlockSpec((9, Cout, Cmid), lambda n: (0, 0, 0)),
            pl.BlockSpec((Cout, 1), lambda n: (0, 0)),
            pl.BlockSpec((Cout, 1), lambda n: (0, 0)),
        ],
        out_specs=pl.BlockSpec((B, Cout, hw), lambda n: (n, 0, 0)),
        compiler_params=pltpu.CompilerParams(
            dimension_semantics=("parallel",)),
    )(x2d, w1t, g1, b1, w2t, g2, b2)

    # (N, Cout, H*W) -> NCHW: metadata-only reshape (no transpose anywhere).
    return y.reshape(N, Cout, H, W)


# ------------------------- plain-JAX reference ------------------------------
def _ref_stage(x, w, gamma, beta, apply_gelu_out, residual_x=None):
    y = lax.conv_general_dilated(x, w, (1, 1), [(1, 1), (1, 1)],
                                 dimension_numbers=("NHWC", "HWIO", "NHWC"))
    mean = jnp.mean(y, axis=(1, 2, 3), keepdims=True)
    var = jnp.mean((y - mean) ** 2, axis=(1, 2, 3), keepdims=True)
    y = (y - mean) * lax.rsqrt(var + EPS)
    y = y * gamma.reshape(1, 1, 1, -1) + beta.reshape(1, 1, 1, -1)
    if apply_gelu_out:
        y = _gelu(y)
    if residual_x is not None:
        y = _gelu(residual_x + y)
    return y


def double_conv_ref(x_nchw, params, residual=False):
    x = jnp.transpose(x_nchw, (0, 2, 3, 1)).astype(jnp.float32)
    h = _ref_stage(x, params["w1"], params["g1"], params["b1"], True)
    y = _ref_stage(h, params["w2"], params["g2"], params["b2"], False,
                   residual_x=x if residual else None)
    return jnp.transpose(y, (0, 3, 1, 2))


# ------------------------------- params -------------------------------------
def init_params(key, in_channels, out_channels, mid_channels=None):
    if not mid_channels:
        mid_channels = out_channels
    k1, k2, k3, k4 = jax.random.split(key, 4)
    scale1 = 1.0 / math.sqrt(9 * in_channels)
    scale2 = 1.0 / math.sqrt(9 * mid_channels)
    return {
        "w1": scale1 * jax.random.normal(k1, (3, 3, in_channels, mid_channels), jnp.float32),
        "g1": 1.0 + 0.1 * jax.random.normal(k3, (mid_channels,), jnp.float32),
        "b1": 0.1 * jax.random.normal(k4, (mid_channels,), jnp.float32),
        "w2": scale2 * jax.random.normal(k2, (3, 3, mid_channels, out_channels), jnp.float32),
        "g2": jnp.ones((out_channels,), jnp.float32),
        "b2": jnp.zeros((out_channels,), jnp.float32),
    }


if __name__ == "__main__":
    key = jax.random.PRNGKey(0)
    kx1, kx2, kp1, kp2 = jax.random.split(key, 4)

    # Case 1: residual=False, in=4 -> out=8, 16x16 spatial, batch=2
    x1 = jax.random.normal(kx1, (2, 4, 16, 16), jnp.float32)
    p1 = init_params(kp1, 4, 8)
    out1 = jax.block_until_ready(double_conv(x1, p1, residual=False))
    ref1 = double_conv_ref(x1, p1, residual=False)
    assert out1.shape == (2, 8, 16, 16)
    assert jnp.allclose(out1, ref1, rtol=1e-3, atol=1e-3), \
        f"mismatch (residual=False): {jnp.max(jnp.abs(out1 - ref1))}"

    # Case 2: residual=True, in=out=4
    x2 = jax.random.normal(kx2, (2, 4, 16, 16), jnp.float32)
    p2 = init_params(kp2, 4, 4)
    out2 = jax.block_until_ready(double_conv(x2, p2, residual=True))
    ref2 = double_conv_ref(x2, p2, residual=True)
    assert out2.shape == (2, 4, 16, 16)
    assert jnp.allclose(out2, ref2, rtol=1e-3, atol=1e-3), \
        f"mismatch (residual=True): {jnp.max(jnp.abs(out2 - ref2))}"

    print("KERNEL_OK")
</pallas_src>

<mosaic_0001>
module attributes {stable_mosaic.version = 11 : i64} {
  func.func @_double_conv_kernel(%arg0: i32, %arg1: memref<1x4x256xf32, #tpu.memory_space<vmem>>, %arg2: memref<9x8x4xf32, #tpu.memory_space<vmem>>, %arg3: memref<8x1xf32, #tpu.memory_space<vmem>>, %arg4: memref<8x1xf32, #tpu.memory_space<vmem>>, %arg5: memref<9x8x8xf32, #tpu.memory_space<vmem>>, %arg6: memref<8x1xf32, #tpu.memory_space<vmem>>, %arg7: memref<8x1xf32, #tpu.memory_space<vmem>>, %arg8: memref<1x8x256xf32, #tpu.memory_space<vmem>>) attributes {dimension_semantics = [#tpu.dimension_semantics<parallel>], iteration_bounds = array<i64: 2>, scalar_prefetch = 0 : i64, scratch_operands = 0 : i64, tpu.core_type = #tpu.core_type<tc>, window_params = [{transform_indices = @transform_0, window_bounds = array<i64: 1, 4, 256>}, {pipeline_mode = #tpu.pipeline_mode<synchronous>, transform_indices = @transform_1, window_bounds = array<i64: 9, 8, 4>}, {pipeline_mode = #tpu.pipeline_mode<synchronous>, transform_indices = @transform_2, window_bounds = array<i64: 8, 1>}, {pipeline_mode = #tpu.pipeline_mode<synchronous>, transform_indices = @transform_3, window_bounds = array<i64: 8, 1>}, {pipeline_mode = #tpu.pipeline_mode<synchronous>, transform_indices = @transform_4, window_bounds = array<i64: 9, 8, 8>}, {pipeline_mode = #tpu.pipeline_mode<synchronous>, transform_indices = @transform_5, window_bounds = array<i64: 8, 1>}, {pipeline_mode = #tpu.pipeline_mode<synchronous>, transform_indices = @transform_6, window_bounds = array<i64: 8, 1>}, {transform_indices = @transform_7, window_bounds = array<i64: 1, 8, 256>}]} {
    %0 = tpu.iota {dimensions = array<i32: 1>} : vector<1x256xi32>
    %c16_i32 = arith.constant 16 : i32
    %c0_i32 = arith.constant 0 : i32
    %1 = arith.cmpi eq, %c16_i32, %c0_i32 : i32
    %c1_i32 = arith.constant 1 : i32
    %2 = arith.select %1, %c1_i32, %c16_i32 : i32
    %3 = vector.broadcast %2 : i32 to vector<1x256xi32>
    %4 = arith.remsi %0, %3 : vector<1x256xi32>
    %c0_i32_0 = arith.constant 0 : i32
    %5 = vector.broadcast %c0_i32_0 : i32 to vector<1x256xi32>
    %6 = arith.cmpi ne, %4, %5 : vector<1x256xi32>
    %c0_i32_1 = arith.constant 0 : i32
    %7 = vector.broadcast %c0_i32_1 : i32 to vector<1x256xi32>
    %8 = arith.cmpi slt, %4, %7 : vector<1x256xi32>
    %c0_i32_2 = arith.constant 0 : i32
    %9 = arith.cmpi slt, %2, %c0_i32_2 : i32
    %10 = vector.broadcast %9 : i1 to vector<1x256xi1>
    %11 = vector.broadcast %10 : vector<1x256xi1> to vector<1x256xi1>
    %12 = arith.xori %8, %11 : vector<1x256xi1>
    %13 = arith.andi %12, %6 : vector<1x256xi1>
    %14 = vector.broadcast %2 : i32 to vector<1x256xi32>
    %15 = arith.addi %4, %14 : vector<1x256xi32>
    %16 = arith.select %13, %15, %4 : vector<1x256xi1>, vector<1x256xi32>
    %c1_i32_3 = arith.constant 1 : i32
    %17 = vector.broadcast %c1_i32_3 : i32 to vector<1x256xi32>
    %18 = arith.cmpi sge, %16, %17 : vector<1x256xi32>
    %c14_i32 = arith.constant 14 : i32
    %19 = vector.broadcast %c14_i32 : i32 to vector<1x256xi32>
    %20 = arith.cmpi sle, %16, %19 : vector<1x256xi32>
    %c0 = arith.constant 0 : index
    %c0_4 = arith.constant 0 : index
    %c0_5 = arith.constant 0 : index
    %21 = vector.load %arg2[%c0, %c0_4, %c0_5] : memref<9x8x4xf32, #tpu.memory_space<vmem>>, vector<1x8x4xf32>
    %22 = vector.shape_cast %21 : vector<1x8x4xf32> to vector<8x4xf32>
    %c1 = arith.constant 1 : index
    %c0_6 = arith.constant 0 : index
    %c0_7 = arith.constant 0 : index
    %23 = vector.load %arg2[%c1, %c0_6, %c0_7] : memref<9x8x4xf32, #tpu.memory_space<vmem>>, vector<1x8x4xf32>
    %24 = vector.shape_cast %23 : vector<1x8x4xf32> to vector<8x4xf32>
    %c2 = arith.constant 2 : index
    %c0_8 = arith.constant 0 : index
    %c0_9 = arith.constant 0 : index
    %25 = vector.load %arg2[%c2, %c0_8, %c0_9] : memref<9x8x4xf32, #tpu.memory_space<vmem>>, vector<1x8x4xf32>
    %26 = vector.shape_cast %25 : vector<1x8x4xf32> to vector<8x4xf32>
    %c3 = arith.constant 3 : index
    %c0_10 = arith.constant 0 : index
    %c0_11 = arith.constant 0 : index
    %27 = vector.load %arg2[%c3, %c0_10, %c0_11] : memref<9x8x4xf32, #tpu.memory_space<vmem>>, vector<1x8x4xf32>
    %28 = vector.shape_cast %27 : vector<1x8x4xf32> to vector<8x4xf32>
    %c4 = arith.constant 4 : index
    %c0_12 = arith.constant 0 : index
    %c0_13 = arith.constant 0 : index
    %29 = vector.load %arg2[%c4, %c0_12, %c0_13] : memref<9x8x4xf32, #tpu.memory_space<vmem>>, vector<1x8x4xf32>
    %30 = vector.shape_cast %29 : vector<1x8x4xf32> to vector<8x4xf32>
    %c5 = arith.constant 5 : index
    %c0_14 = arith.constant 0 : index
    %c0_15 = arith.constant 0 : index
    %31 = vector.load %arg2[%c5, %c0_14, %c0_15] : memref<9x8x4xf32, #tpu.memory_space<vmem>>, vector<1x8x4xf32>
    %32 = vector.shape_cast %31 : vector<1x8x4xf32> to vector<8x4xf32>
    %c6 = arith.constant 6 : index
    %c0_16 = arith.constant 0 : index
    %c0_17 = arith.constant 0 : index
    %33 = vector.load %arg2[%c6, %c0_16, %c0_17] : memref<9x8x4xf32, #tpu.memory_space<vmem>>, vector<1x8x4xf32>
    %34 = vector.shape_cast %33 : vector<1x8x4xf32> to vector<8x4xf32>
    %c7 = arith.constant 7 : index
    %c0_18 = arith.constant 0 : index
    %c0_19 = arith.constant 0 : index
    %35 = vector.load %arg2[%c7, %c0_18, %c0_19] : memref<9x8x4xf32, #tpu.memory_space<vmem>>, vector<1x8x4xf32>
    %36 = vector.shape_cast %35 : vector<1x8x4xf32> to vector<8x4xf32>
    %c8 = arith.constant 8 : index
    %c0_20 = arith.constant 0 : index
    %c0_21 = arith.constant 0 : index
    %37 = vector.load %arg2[%c8, %c0_20, %c0_21] : memref<9x8x4xf32, #tpu.memory_space<vmem>>, vector<1x8x4xf32>
    %38 = vector.shape_cast %37 : vector<1x8x4xf32> to vector<8x4xf32>
    %c0_22 = arith.constant 0 : index
    %c0_23 = arith.constant 0 : index
    %c0_24 = arith.constant 0 : index
    %39 = vector.load %arg5[%c0_22, %c0_23, %c0_24] : memref<9x8x8xf32, #tpu.memory_space<vmem>>, vector<1x8x8xf32>
    %40 = vector.shape_cast %39 : vector<1x8x8xf32> to vector<8x8xf32>
    %c1_25 = arith.constant 1 : index
    %c0_26 = arith.constant 0 : index
    %c0_27 = arith.constant 0 : index
    %41 = vector.load %arg5[%c1_25, %c0_26, %c0_27] : memref<9x8x8xf32, #tpu.memory_space<vmem>>, vector<1x8x8xf32>
    %42 = vector.shape_cast %41 : vector<1x8x8xf32> to vector<8x8xf32>
    %c2_28 = arith.constant 2 : index
    %c0_29 = arith.constant 0 : index
    %c0_30 = arith.constant 0 : index
    %43 = vector.load %arg5[%c2_28, %c0_29, %c0_30] : memref<9x8x8xf32, #tpu.memory_space<vmem>>, vector<1x8x8xf32>
    %44 = vector.shape_cast %43 : vector<1x8x8xf32> to vector<8x8xf32>
    %c3_31 = arith.constant 3 : index
    %c0_32 = arith.constant 0 : index
    %c0_33 = arith.constant 0 : index
    %45 = vector.load %arg5[%c3_31, %c0_32, %c0_33] : memref<9x8x8xf32, #tpu.memory_space<vmem>>, vector<1x8x8xf32>
    %46 = vector.shape_cast %45 : vector<1x8x8xf32> to vector<8x8xf32>
    %c4_34 = arith.constant 4 : index
    %c0_35 = arith.constant 0 : index
    %c0_36 = arith.constant 0 : index
    %47 = vector.load %arg5[%c4_34, %c0_35, %c0_36] : memref<9x8x8xf32, #tpu.memory_space<vmem>>, vector<1x8x8xf32>
    %48 = vector.shape_cast %47 : vector<1x8x8xf32> to vector<8x8xf32>
    %c5_37 = arith.constant 5 : index
    %c0_38 = arith.constant 0 : index
    %c0_39 = arith.constant 0 : index
    %49 = vector.load %arg5[%c5_37, %c0_38, %c0_39] : memref<9x8x8xf32, #tpu.memory_space<vmem>>, vector<1x8x8xf32>
    %50 = vector.shape_cast %49 : vector<1x8x8xf32> to vector<8x8xf32>
    %c6_40 = arith.constant 6 : index
    %c0_41 = arith.constant 0 : index
    %c0_42 = arith.constant 0 : index
    %51 = vector.load %arg5[%c6_40, %c0_41, %c0_42] : memref<9x8x8xf32, #tpu.memory_space<vmem>>, vector<1x8x8xf32>
    %52 = vector.shape_cast %51 : vector<1x8x8xf32> to vector<8x8xf32>
    %c7_43 = arith.constant 7 : index
    %c0_44 = arith.constant 0 : index
    %c0_45 = arith.constant 0 : index
    %53 = vector.load %arg5[%c7_43, %c0_44, %c0_45] : memref<9x8x8xf32, #tpu.memory_space<vmem>>, vector<1x8x8xf32>
    %54 = vector.shape_cast %53 : vector<1x8x8xf32> to vector<8x8xf32>
    %c8_46 = arith.constant 8 : index
    %c0_47 = arith.constant 0 : index
    %c0_48 = arith.constant 0 : index
    %55 = vector.load %arg5[%c8_46, %c0_47, %c0_48] : memref<9x8x8xf32, #tpu.memory_space<vmem>>, vector<1x8x8xf32>
    %56 = vector.shape_cast %55 : vector<1x8x8xf32> to vector<8x8xf32>
    %c0_49 = arith.constant 0 : index
    %c0_50 = arith.constant 0 : index
    %57 = vector.load %arg3[%c0_49, %c0_50] : memref<8x1xf32, #tpu.memory_space<vmem>>, vector<8x1xf32>
    %c0_51 = arith.constant 0 : index
    %c0_52 = arith.constant 0 : index
    %58 = vector.load %arg4[%c0_51, %c0_52] : memref<8x1xf32, #tpu.memory_space<vmem>>, vector<8x1xf32>
    %c0_53 = arith.constant 0 : index
    %c0_54 = arith.constant 0 : index
    %59 = vector.load %arg6[%c0_53, %c0_54] : memref<8x1xf32, #tpu.memory_space<vmem>>, vector<8x1xf32>
    %c0_55 = arith.constant 0 : index
    %c0_56 = arith.constant 0 : index
    %60 = vector.load %arg7[%c0_55, %c0_56] : memref<8x1xf32, #tpu.memory_space<vmem>>, vector<8x1xf32>
    %c0_57 = arith.constant 0 : index
    %c0_58 = arith.constant 0 : index
    %c0_59 = arith.constant 0 : index
    %61 = vector.load %arg1[%c0_57, %c0_58, %c0_59] : memref<1x4x256xf32, #tpu.memory_space<vmem>>, vector<1x4x256xf32>
    %62 = vector.shape_cast %61 : vector<1x4x256xf32> to vector<4x256xf32>
    %cst = arith.constant 0.000000e+00 : f32
    %63 = vector.broadcast %cst : f32 to vector<4x17xf32>
    %64 = tpu.concatenate %63, %62, %63 in 1 : vector<4x17xf32>, vector<4x256xf32>, vector<4x17xf32> -> vector<4x290xf32>
    %65 = vector.extract_strided_slice %64 {offsets = [0, 0], sizes = [4, 256], strides = [1, 1]} : vector<4x290xf32> to vector<4x256xf32>
    %cst_60 = arith.constant 0.000000e+00 : f32
    %66 = vector.shape_cast %18 : vector<1x256xi1> to vector<1x256xi1>
    %67 = vector.broadcast %66 : vector<1x256xi1> to vector<4x256xi1>
    %68 = vector.broadcast %cst_60 : f32 to vector<4x256xf32>
    %69 = arith.select %67, %65, %68 : vector<4x256xi1>, vector<4x256xf32>
    %cst_61 = arith.constant dense<0.000000e+00> : vector<8x256xf32>
    %70 = tpu.matmul %22, %69, %cst_61 {dimension_numbers = #tpu.dot_dimension_numbers<[1], [0], [0], [1], [0, 0, 1, 1], [], []>} : vector<8x4xf32>, vector<4x256xf32>, vector<8x256xf32> -> vector<8x256xf32>
    %71 = vector.extract_strided_slice %64 {offsets = [0, 1], sizes = [4, 256], strides = [1, 1]} : vector<4x290xf32> to vector<4x256xf32>
    %cst_62 = arith.constant dense<0.000000e+00> : vector<8x256xf32>
    %72 = tpu.matmul %24, %71, %cst_62 {dimension_numbers = #tpu.dot_dimension_numbers<[1], [0], [0], [1], [0, 0, 1, 1], [], []>} : vector<8x4xf32>, vector<4x256xf32>, vector<8x256xf32> -> vector<8x256xf32>
    %73 = arith.addf %70, %72 : vector<8x256xf32>
    %74 = vector.extract_strided_slice %64 {offsets = [0, 2], sizes = [4, 256], strides = [1, 1]} : vector<4x290xf32> to vector<4x256xf32>
    %cst_63 = arith.constant 0.000000e+00 : f32
    %75 = vector.shape_cast %20 : vector<1x256xi1> to vector<1x256xi1>
    %76 = vector.broadcast %75 : vector<1x256xi1> to vector<4x256xi1>
    %77 = vector.broadcast %cst_63 : f32 to vector<4x256xf32>
    %78 = arith.select %76, %74, %77 : vector<4x256xi1>, vector<4x256xf32>
    %cst_64 = arith.constant dense<0.000000e+00> : vector<8x256xf32>
    %79 = tpu.matmul %26, %78, %cst_64 {dimension_numbers = #tpu.dot_dimension_numbers<[1], [0], [0], [1], [0, 0, 1, 1], [], []>} : vector<8x4xf32>, vector<4x256xf32>, vector<8x256xf32> -> vector<8x256xf32>
    %80 = arith.addf %73, %79 : vector<8x256xf32>
    %81 = vector.extract_strided_slice %64 {offsets = [0, 16], sizes = [4, 256], strides = [1, 1]} : vector<4x290xf32> to vector<4x256xf32>
    %cst_65 = arith.constant 0.000000e+00 : f32
    %82 = vector.shape_cast %18 : vector<1x256xi1> to vector<1x256xi1>
    %83 = vector.broadcast %82 : vector<1x256xi1> to vector<4x256xi1>
    %84 = vector.broadcast %cst_65 : f32 to vector<4x256xf32>
    %85 = arith.select %83, %81, %84 : vector<4x256xi1>, vector<4x256xf32>
    %cst_66 = arith.constant dense<0.000000e+00> : vector<8x256xf32>
    %86 = tpu.matmul %28, %85, %cst_66 {dimension_numbers = #tpu.dot_dimension_numbers<[1], [0], [0], [1], [0, 0, 1, 1], [], []>} : vector<8x4xf32>, vector<4x256xf32>, vector<8x256xf32> -> vector<8x256xf32>
    %87 = arith.addf %80, %86 : vector<8x256xf32>
    %cst_67 = arith.constant dense<0.000000e+00> : vector<8x256xf32>
    %88 = tpu.matmul %30, %62, %cst_67 {dimension_numbers = #tpu.dot_dimension_numbers<[1], [0], [0], [1], [0, 0, 1, 1], [], []>} : vector<8x4xf32>, vector<4x256xf32>, vector<8x256xf32> -> vector<8x256xf32>
    %89 = arith.addf %87, %88 : vector<8x256xf32>
    %90 = vector.extract_strided_slice %64 {offsets = [0, 18], sizes = [4, 256], strides = [1, 1]} : vector<4x290xf32> to vector<4x256xf32>
    %cst_68 = arith.constant 0.000000e+00 : f32
    %91 = vector.shape_cast %20 : vector<1x256xi1> to vector<1x256xi1>
    %92 = vector.broadcast %91 : vector<1x256xi1> to vector<4x256xi1>
    %93 = vector.broadcast %cst_68 : f32 to vector<4x256xf32>
    %94 = arith.select %92, %90, %93 : vector<4x256xi1>, vector<4x256xf32>
    %cst_69 = arith.constant dense<0.000000e+00> : vector<8x256xf32>
    %95 = tpu.matmul %32, %94, %cst_69 {dimension_numbers = #tpu.dot_dimension_numbers<[1], [0], [0], [1], [0, 0, 1, 1], [], []>} : vector<8x4xf32>, vector<4x256xf32>, vector<8x256xf32> -> vector<8x256xf32>
    %96 = arith.addf %89, %95 : vector<8x256xf32>
    %97 = vector.extract_strided_slice %64 {offsets = [0, 32], sizes = [4, 256], strides = [1, 1]} : vector<4x290xf32> to vector<4x256xf32>
    %cst_70 = arith.constant 0.000000e+00 : f32
    %98 = vector.shape_cast %18 : vector<1x256xi1> to vector<1x256xi1>
    %99 = vector.broadcast %98 : vector<1x256xi1> to vector<4x256xi1>
    %100 = vector.broadcast %cst_70 : f32 to vector<4x256xf32>
    %101 = arith.select %99, %97, %100 : vector<4x256xi1>, vector<4x256xf32>
    %cst_71 = arith.constant dense<0.000000e+00> : vector<8x256xf32>
    %102 = tpu.matmul %34, %101, %cst_71 {dimension_numbers = #tpu.dot_dimension_numbers<[1], [0], [0], [1], [0, 0, 1, 1], [], []>} : vector<8x4xf32>, vector<4x256xf32>, vector<8x256xf32> -> vector<8x256xf32>
    %103 = arith.addf %96, %102 : vector<8x256xf32>
    %104 = vector.extract_strided_slice %64 {offsets = [0, 33], sizes = [4, 256], strides = [1, 1]} : vector<4x290xf32> to vector<4x256xf32>
    %cst_72 = arith.constant dense<0.000000e+00> : vector<8x256xf32>
    %105 = tpu.matmul %36, %104, %cst_72 {dimension_numbers = #tpu.dot_dimension_numbers<[1], [0], [0], [1], [0, 0, 1, 1], [], []>} : vector<8x4xf32>, vector<4x256xf32>, vector<8x256xf32> -> vector<8x256xf32>
    %106 = arith.addf %103, %105 : vector<8x256xf32>
    %107 = vector.extract_strided_slice %64 {offsets = [0, 34], sizes = [4, 256], strides = [1, 1]} : vector<4x290xf32> to vector<4x256xf32>
    %cst_73 = arith.constant 0.000000e+00 : f32
    %108 = vector.shape_cast %20 : vector<1x256xi1> to vector<1x256xi1>
    %109 = vector.broadcast %108 : vector<1x256xi1> to vector<4x256xi1>
    %110 = vector.broadcast %cst_73 : f32 to vector<4x256xf32>
    %111 = arith.select %109, %107, %110 : vector<4x256xi1>, vector<4x256xf32>
    %cst_74 = arith.constant dense<0.000000e+00> : vector<8x256xf32>
    %112 = tpu.matmul %38, %111, %cst_74 {dimension_numbers = #tpu.dot_dimension_numbers<[1], [0], [0], [1], [0, 0, 1, 1], [], []>} : vector<8x4xf32>, vector<4x256xf32>, vector<8x256xf32> -> vector<8x256xf32>
    %113 = arith.addf %106, %112 : vector<8x256xf32>
    %114 = vector.shape_cast %113 : vector<8x256xf32> to vector<1x8x256xf32>
    %cst_75 = arith.constant dense<0.000000e+00> : vector<1xf32>
    %115 = vector.multi_reduction <add>, %114, %cst_75 [1, 2] : vector<1x8x256xf32> to vector<1xf32>
    %116 = vector.shape_cast %115 : vector<1xf32> to vector<1x1x1xf32>
    %117 = vector.extract %116[0, 0, 0] : f32 from vector<1x1x1xf32>
    %cst_76 = arith.constant 4.8828125E-4 : f32
    %118 = arith.mulf %117, %cst_76 : f32
    %119 = vector.broadcast %118 : f32 to vector<8x256xf32>
    %120 = arith.subf %113, %119 : vector<8x256xf32>
    %121 = arith.mulf %120, %120 : vector<8x256xf32>
    %122 = vector.shape_cast %121 : vector<8x256xf32> to vector<1x8x256xf32>
    %cst_77 = arith.constant dense<0.000000e+00> : vector<1xf32>
    %123 = vector.multi_reduction <add>, %122, %cst_77 [1, 2] : vector<1x8x256xf32> to vector<1xf32>
    %124 = vector.shape_cast %123 : vector<1xf32> to vector<1x1x1xf32>
    %125 = vector.extract %124[0, 0, 0] : f32 from vector<1x1x1xf32>
    %cst_78 = arith.constant 4.8828125E-4 : f32
    %126 = arith.mulf %125, %cst_78 : f32
    %cst_79 = arith.constant 9.99999974E-6 : f32
    %127 = arith.addf %126, %cst_79 : f32
    %128 = math.rsqrt %127 : f32
    %129 = vector.broadcast %128 : f32 to vector<8x256xf32>
    %130 = arith.mulf %120, %129 : vector<8x256xf32>
    %131 = vector.broadcast %57 : vector<8x1xf32> to vector<8x256xf32>
    %132 = arith.mulf %130, %131 : vector<8x256xf32>
    %133 = vector.broadcast %58 : vector<8x1xf32> to vector<8x256xf32>
    %134 = arith.addf %132, %133 : vector<8x256xf32>
    %cst_80 = arith.constant 5.000000e-01 : f32
    %135 = vector.broadcast %cst_80 : f32 to vector<8x256xf32>
    %136 = arith.mulf %135, %134 : vector<8x256xf32>
    %cst_81 = arith.constant 0.707106769 : f32
    %137 = vector.broadcast %cst_81 : f32 to vector<8x256xf32>
    %138 = arith.mulf %134, %137 : vector<8x256xf32>
    %139 = math.erf %138 : vector<8x256xf32>
    %cst_82 = arith.constant 1.000000e+00 : f32
    %140 = vector.broadcast %cst_82 : f32 to vector<8x256xf32>
    %141 = arith.addf %140, %139 : vector<8x256xf32>
    %142 = arith.mulf %136, %141 : vector<8x256xf32>
    %cst_83 = arith.constant 0.000000e+00 : f32
    %143 = vector.broadcast %cst_83 : f32 to vector<8x17xf32>
    %144 = tpu.concatenate %143, %142, %143 in 1 : vector<8x17xf32>, vector<8x256xf32>, vector<8x17xf32> -> vector<8x290xf32>
    %145 = vector.extract_strided_slice %144 {offsets = [0, 0], sizes = [8, 256], strides = [1, 1]} : vector<8x290xf32> to vector<8x256xf32>
    %cst_84 = arith.constant 0.000000e+00 : f32
    %146 = vector.shape_cast %18 : vector<1x256xi1> to vector<1x256xi1>
    %147 = vector.broadcast %146 : vector<1x256xi1> to vector<8x256xi1>
    %148 = vector.broadcast %cst_84 : f32 to vector<8x256xf32>
    %149 = arith.select %147, %145, %148 : vector<8x256xi1>, vector<8x256xf32>
    %cst_85 = arith.constant dense<0.000000e+00> : vector<8x256xf32>
    %150 = tpu.matmul %40, %149, %cst_85 {dimension_numbers = #tpu.dot_dimension_numbers<[1], [0], [0], [1], [0, 0, 1, 1], [], []>} : vector<8x8xf32>, vector<8x256xf32>, vector<8x256xf32> -> vector<8x256xf32>
    %151 = vector.extract_strided_slice %144 {offsets = [0, 1], sizes = [8, 256], strides = [1, 1]} : vector<8x290xf32> to vector<8x256xf32>
    %cst_86 = arith.constant dense<0.000000e+00> : vector<8x256xf32>
    %152 = tpu.matmul %42, %151, %cst_86 {dimension_numbers = #tpu.dot_dimension_numbers<[1], [0], [0], [1], [0, 0, 1, 1], [], []>} : vector<8x8xf32>, vector<8x256xf32>, vector<8x256xf32> -> vector<8x256xf32>
    %153 = arith.addf %150, %152 : vector<8x256xf32>
    %154 = vector.extract_strided_slice %144 {offsets = [0, 2], sizes = [8, 256], strides = [1, 1]} : vector<8x290xf32> to vector<8x256xf32>
    %cst_87 = arith.constant 0.000000e+00 : f32
    %155 = vector.shape_cast %20 : vector<1x256xi1> to vector<1x256xi1>
    %156 = vector.broadcast %155 : vector<1x256xi1> to vector<8x256xi1>
    %157 = vector.broadcast %cst_87 : f32 to vector<8x256xf32>
    %158 = arith.select %156, %154, %157 : vector<8x256xi1>, vector<8x256xf32>
    %cst_88 = arith.constant dense<0.000000e+00> : vector<8x256xf32>
    %159 = tpu.matmul %44, %158, %cst_88 {dimension_numbers = #tpu.dot_dimension_numbers<[1], [0], [0], [1], [0, 0, 1, 1], [], []>} : vector<8x8xf32>, vector<8x256xf32>, vector<8x256xf32> -> vector<8x256xf32>
    %160 = arith.addf %153, %159 : vector<8x256xf32>
    %161 = vector.extract_strided_slice %144 {offsets = [0, 16], sizes = [8, 256], strides = [1, 1]} : vector<8x290xf32> to vector<8x256xf32>
    %cst_89 = arith.constant 0.000000e+00 : f32
    %162 = vector.shape_cast %18 : vector<1x256xi1> to vector<1x256xi1>
    %163 = vector.broadcast %162 : vector<1x256xi1> to vector<8x256xi1>
    %164 = vector.broadcast %cst_89 : f32 to vector<8x256xf32>
    %165 = arith.select %163, %161, %164 : vector<8x256xi1>, vector<8x256xf32>
    %cst_90 = arith.constant dense<0.000000e+00> : vector<8x256xf32>
    %166 = tpu.matmul %46, %165, %cst_90 {dimension_numbers = #tpu.dot_dimension_numbers<[1], [0], [0], [1], [0, 0, 1, 1], [], []>} : vector<8x8xf32>, vector<8x256xf32>, vector<8x256xf32> -> vector<8x256xf32>
    %167 = arith.addf %160, %166 : vector<8x256xf32>
    %cst_91 = arith.constant dense<0.000000e+00> : vector<8x256xf32>
    %168 = tpu.matmul %48, %142, %cst_91 {dimension_numbers = #tpu.dot_dimension_numbers<[1], [0], [0], [1], [0, 0, 1, 1], [], []>} : vector<8x8xf32>, vector<8x256xf32>, vector<8x256xf32> -> vector<8x256xf32>
    %169 = arith.addf %167, %168 : vector<8x256xf32>
    %170 = vector.extract_strided_slice %144 {offsets = [0, 18], sizes = [8, 256], strides = [1, 1]} : vector<8x290xf32> to vector<8x256xf32>
    %cst_92 = arith.constant 0.000000e+00 : f32
    %171 = vector.shape_cast %20 : vector<1x256xi1> to vector<1x256xi1>
    %172 = vector.broadcast %171 : vector<1x256xi1> to vector<8x256xi1>
    %173 = vector.broadcast %cst_92 : f32 to vector<8x256xf32>
    %174 = arith.select %172, %170, %173 : vector<8x256xi1>, vector<8x256xf32>
    %cst_93 = arith.constant dense<0.000000e+00> : vector<8x256xf32>
    %175 = tpu.matmul %50, %174, %cst_93 {dimension_numbers = #tpu.dot_dimension_numbers<[1], [0], [0], [1], [0, 0, 1, 1], [], []>} : vector<8x8xf32>, vector<8x256xf32>, vector<8x256xf32> -> vector<8x256xf32>
    %176 = arith.addf %169, %175 : vector<8x256xf32>
    %177 = vector.extract_strided_slice %144 {offsets = [0, 32], sizes = [8, 256], strides = [1, 1]} : vector<8x290xf32> to vector<8x256xf32>
    %cst_94 = arith.constant 0.000000e+00 : f32
    %178 = vector.shape_cast %18 : vector<1x256xi1> to vector<1x256xi1>
    %179 = vector.broadcast %178 : vector<1x256xi1> to vector<8x256xi1>
    %180 = vector.broadcast %cst_94 : f32 to vector<8x256xf32>
    %181 = arith.select %179, %177, %180 : vector<8x256xi1>, vector<8x256xf32>
    %cst_95 = arith.constant dense<0.000000e+00> : vector<8x256xf32>
    %182 = tpu.matmul %52, %181, %cst_95 {dimension_numbers = #tpu.dot_dimension_numbers<[1], [0], [0], [1], [0, 0, 1, 1], [], []>} : vector<8x8xf32>, vector<8x256xf32>, vector<8x256xf32> -> vector<8x256xf32>
    %183 = arith.addf %176, %182 : vector<8x256xf32>
    %184 = vector.extract_strided_slice %144 {offsets = [0, 33], sizes = [8, 256], strides = [1, 1]} : vector<8x290xf32> to vector<8x256xf32>
    %cst_96 = arith.constant dense<0.000000e+00> : vector<8x256xf32>
    %185 = tpu.matmul %54, %184, %cst_96 {dimension_numbers = #tpu.dot_dimension_numbers<[1], [0], [0], [1], [0, 0, 1, 1], [], []>} : vector<8x8xf32>, vector<8x256xf32>, vector<8x256xf32> -> vector<8x256xf32>
    %186 = arith.addf %183, %185 : vector<8x256xf32>
    %187 = vector.extract_strided_slice %144 {offsets = [0, 34], sizes = [8, 256], strides = [1, 1]} : vector<8x290xf32> to vector<8x256xf32>
    %cst_97 = arith.constant 0.000000e+00 : f32
    %188 = vector.shape_cast %20 : vector<1x256xi1> to vector<1x256xi1>
    %189 = vector.broadcast %188 : vector<1x256xi1> to vector<8x256xi1>
    %190 = vector.broadcast %cst_97 : f32 to vector<8x256xf32>
    %191 = arith.select %189, %187, %190 : vector<8x256xi1>, vector<8x256xf32>
    %cst_98 = arith.constant dense<0.000000e+00> : vector<8x256xf32>
    %192 = tpu.matmul %56, %191, %cst_98 {dimension_numbers = #tpu.dot_dimension_numbers<[1], [0], [0], [1], [0, 0, 1, 1], [], []>} : vector<8x8xf32>, vector<8x256xf32>, vector<8x256xf32> -> vector<8x256xf32>
    %193 = arith.addf %186, %192 : vector<8x256xf32>
    %194 = vector.shape_cast %193 : vector<8x256xf32> to vector<1x8x256xf32>
    %cst_99 = arith.constant dense<0.000000e+00> : vector<1xf32>
    %195 = vector.multi_reduction <add>, %194, %cst_99 [1, 2] : vector<1x8x256xf32> to vector<1xf32>
    %196 = vector.shape_cast %195 : vector<1xf32> to vector<1x1x1xf32>
    %197 = vector.extract %196[0, 0, 0] : f32 from vector<1x1x1xf32>
    %cst_100 = arith.constant 4.8828125E-4 : f32
    %198 = arith.mulf %197, %cst_100 : f32
    %199 = vector.broadcast %198 : f32 to vector<8x256xf32>
    %200 = arith.subf %193, %199 : vector<8x256xf32>
    %201 = arith.mulf %200, %200 : vector<8x256xf32>
    %202 = vector.shape_cast %201 : vector<8x256xf32> to vector<1x8x256xf32>
    %cst_101 = arith.constant dense<0.000000e+00> : vector<1xf32>
    %203 = vector.multi_reduction <add>, %202, %cst_101 [1, 2] : vector<1x8x256xf32> to vector<1xf32>
    %204 = vector.shape_cast %203 : vector<1xf32> to vector<1x1x1xf32>
    %205 = vector.extract %204[0, 0, 0] : f32 from vector<1x1x1xf32>
    %cst_102 = arith.constant 4.8828125E-4 : f32
    %206 = arith.mulf %205, %cst_102 : f32
    %cst_103 = arith.constant 9.99999974E-6 : f32
    %207 = arith.addf %206, %cst_103 : f32
    %208 = math.rsqrt %207 : f32
    %209 = vector.broadcast %208 : f32 to vector<8x256xf32>
    %210 = arith.mulf %200, %209 : vector<8x256xf32>
    %211 = vector.broadcast %59 : vector<8x1xf32> to vector<8x256xf32>
    %212 = arith.mulf %210, %211 : vector<8x256xf32>
    %213 = vector.broadcast %60 : vector<8x1xf32> to vector<8x256xf32>
    %214 = arith.addf %212, %213 : vector<8x256xf32>
    %c0_104 = arith.constant 0 : index
    %c0_105 = arith.constant 0 : index
    %c0_106 = arith.constant 0 : index
    %215 = vector.load %arg8[%c0_104, %c0_105, %c0_106] : memref<1x8x256xf32, #tpu.memory_space<vmem>>, vector<1x8x256xf32>
    %216 = vector.shape_cast %215 : vector<1x8x256xf32> to vector<8x256xf32>
    %217 = vector.shape_cast %214 : vector<8x256xf32> to vector<1x8x256xf32>
    tpu.vector_store %arg8[%c0_104, %c0_105, %c0_106], %217 {strides = array<i32>} : memref<1x8x256xf32, #tpu.memory_space<vmem>>, vector<1x8x256xf32>,
    return
  }
  func.func @transform_0(%arg0: i32) -> (i32, i32, i32) {
    %c0_i32 = arith.constant 0 : i32
    %c0_i32_0 = arith.constant 0 : i32
    %c0_i32_1 = arith.constant 0 : i32
    return %arg0, %c0_i32, %c0_i32_0 : i32, i32, i32
  }
  func.func @transform_1(%arg0: i32) -> (i32, i32, i32) {
    %c0_i32 = arith.constant 0 : i32
    %c0_i32_0 = arith.constant 0 : i32
    %c0_i32_1 = arith.constant 0 : i32
    %c0_i32_2 = arith.constant 0 : i32
    return %c0_i32, %c0_i32_0, %c0_i32_1 : i32, i32, i32
  }
  func.func @transform_2(%arg0: i32) -> (i32, i32) {
    %c0_i32 = arith.constant 0 : i32
    %c0_i32_0 = arith.constant 0 : i32
    %c0_i32_1 = arith.constant 0 : i32
    return %c0_i32, %c0_i32_0 : i32, i32
  }
  func.func @transform_3(%arg0: i32) -> (i32, i32) {
    %c0_i32 = arith.constant 0 : i32
    %c0_i32_0 = arith.constant 0 : i32
    %c0_i32_1 = arith.constant 0 : i32
    return %c0_i32, %c0_i32_0 : i32, i32
  }
  func.func @transform_4(%arg0: i32) -> (i32, i32, i32) {
    %c0_i32 = arith.constant 0 : i32
    %c0_i32_0 = arith.constant 0 : i32
    %c0_i32_1 = arith.constant 0 : i32
    %c0_i32_2 = arith.constant 0 : i32
    return %c0_i32, %c0_i32_0, %c0_i32_1 : i32, i32, i32
  }
  func.func @transform_5(%arg0: i32) -> (i32, i32) {
    %c0_i32 = arith.constant 0 : i32
    %c0_i32_0 = arith.constant 0 : i32
    %c0_i32_1 = arith.constant 0 : i32
    return %c0_i32, %c0_i32_0 : i32, i32
  }
  func.func @transform_6(%arg0: i32) -> (i32, i32) {
    %c0_i32 = arith.constant 0 : i32
    %c0_i32_0 = arith.constant 0 : i32
    %c0_i32_1 = arith.constant 0 : i32
    return %c0_i32, %c0_i32_0 : i32, i32
  }
  func.func @transform_7(%arg0: i32) -> (i32, i32, i32) {
    %c0_i32 = arith.constant 0 : i32
    %c0_i32_0 = arith.constant 0 : i32
    %c0_i32_1 = arith.constant 0 : i32
    return %arg0, %c0_i32, %c0_i32_0 : i32, i32, i32
  }
}

</mosaic_0001>

<llo_original>
// kernel: tpu_custom_call.1
$region0: #{tpu_custom_call.1}
  #allocation0 [shape = 'u32[]', space=smem, size = 0x4, offset = 0x4, fixed_abs, tag = 'smem constant byte address 0x4 - core index']
  #allocation1 [shape = 'u32[144,128]{1,0:T(1,128)}', space=vmem, size = 0x12000, scoped, tag = 'internal scratch']
  %s0 = inlined_call_operand.vmem [shape: f32[2,4,256], index: 0, kind: input, shape index: {}]
  %s1 = inlined_call_operand.vmem [shape: f32[9,8,4], index: 1, kind: input, shape index: {}]
  %s2 = inlined_call_operand.vmem [shape: f32[8,1], index: 2, kind: input, shape index: {}]
  %s3 = inlined_call_operand.vmem [shape: f32[8,1], index: 3, kind: input, shape index: {}]
  %s4 = inlined_call_operand.vmem [shape: f32[9,8,8], index: 4, kind: input, shape index: {}]
  %s5 = inlined_call_operand.vmem [shape: f32[8,1], index: 5, kind: input, shape index: {}]
  %s6 = inlined_call_operand.vmem [shape: f32[8,1], index: 6, kind: input, shape index: {}]
  %s7 = inlined_call_operand.hbm [shape: f32[2,8,256], index: 7, kind: output, shape index: {}]
  %s8 = sld [smem:[#allocation0]]
  $region61: #{tpu_custom_call.1} parent=0
    _
  %s10 = ssub.s32 1, %s8
  %s11 = scalar_select 0, %s10, %s8
  $region1: #{tpu_custom_call.1} parent=0
    #allocation2 [shape = 'u8[16384]{0}', space=vmem, size = 0x4000, scoped, tag = 'output window, operand 0']
    #allocation3 [shape = 's32[2]{0}', space=sflag, size = 0x8, scoped, tag = 'scoped memory for tpu_custom_call.1']
    %12 = vsyncpa [#allocation3], 0
    %s13 = scalar_lea.sflag [#allocation3], 1
    %14 = vsyncpa %s13, 0
    loop: start=0, step=1, limit=4
    $region2: #{tpu_custom_call.1} parent=1 // loop_pre_header
      _
    $region3: #{tpu_custom_call.1} parent=1 // loop_header
      %s16 = sphi 0, %s20
      %p17 = scmp.ge.s32.totalorder %s16, 4
      %s26 = sphi 0, %s28
      %s29 = sphi 0, %s26
      %s30 = sphi 0, %s29
      %s46 = sphi 0, %s30
      %s50 = sphi 0, %s50
      %s52 = sphi 0, %s50
      %s53 = sphi 0, %s52
      %s67 = sphi 0, %s53
      %s71 = sphi 0, %s71
      %s73 = sphi 0, %s71
      %s74 = sphi 0, %s73
      %s88 = sphi 0, %s74
      %s92 = sphi 0, %s92
      %s94 = sphi 0, %s92
      %s95 = sphi 0, %s94
      %s109 = sphi 0, %s95
      %s113 = sphi 0, %s113
      %s115 = sphi 0, %s113
      %s116 = sphi 0, %s115
      %s130 = sphi 0, %s116
      %s134 = sphi 0, %s134
      %s136 = sphi 0, %s134
      %s137 = sphi 0, %s136
      %s151 = sphi 0, %s137
      %s155 = sphi 0, %s155
      %s157 = sphi 0, %s155
      %s158 = sphi 0, %s157
      %s172 = sphi 0, %s158
      %s178 = sphi 0, %s180
      %s181 = sphi 0, %s178
      %s182 = sphi 0, %s181
      %s198 = sphi 0, %s182
    $region4: #{tpu_custom_call.1} parent=1 // loop_header_branch
      %19 = sbr.rel (%p17) target = $region8
    $region5: #{tpu_custom_call.1} parent=1 // loop_body
      %s21 = ssub.s32 %s16, 1
      %s22 = ssub.s32 %s16, 2
      %s23 = sadd.s32 %s16, 1
      %s24 = ssub.s32 %s16, %s23
      %p25 = scmp.eq.s32.totalorder %s24, 0
      %s27 = sadd.s32 %s26, 1
      %s28 = scalar_select %p25, %s26, %s27
      %p31 = pneg %p25
      %p32 = scmp.eq.s32.totalorder %s16, 1
      %p33 = por %p31, %p32
      %p34 = scmp.ne.s32.totalorder %s26, %s29
      %p35 = scmp.eq.s32.totalorder %s16, 0
      %p36 = por %p34, %p35
      %p37 = scmp.ne.s32.totalorder %s26, %s29
      %p38 = scmp.eq.s32.totalorder %s21, 1
      %p39 = por %p37, %p38
      %p40 = scmp.ne.s32.totalorder %s29, %s30
      %p41 = scmp.eq.s32.totalorder %s21, 0
      %p42 = por %p40, %p41
      %p43 = scmp.ne.s32.totalorder %s29, %s30
      %p44 = scmp.eq.s32.totalorder %s22, 1
      %p45 = por %p43, %p44
      %p47 = scmp.ne.s32.totalorder %s30, %s46
      %p48 = scmp.eq.s32.totalorder %s22, 0
      %p49 = por %p47, %p48
      %s51 = sadd.s32 %s50, 1
      %p54 = scmp.eq.s32.totalorder %s16, 1
      %p55 = scmp.ne.s32.totalorder %s50, %s52
      %p56 = scmp.eq.s32.totalorder %s16, 0
      %p57 = por %p55, %p56
      %p58 = scmp.ne.s32.totalorder %s50, %s52
      %p59 = scmp.eq.s32.totalorder %s21, 1
      %p60 = por %p58, %p59
      %p61 = scmp.ne.s32.totalorder %s52, %s53
      %p62 = scmp.eq.s32.totalorder %s21, 0
      %p63 = por %p61, %p62
      %p64 = scmp.ne.s32.totalorder %s52, %s53
      %p65 = scmp.eq.s32.totalorder %s22, 1
      %p66 = por %p64, %p65
      %p68 = scmp.ne.s32.totalorder %s53, %s67
      %p69 = scmp.eq.s32.totalorder %s22, 0
      %p70 = por %p68, %p69
      %s72 = sadd.s32 %s71, 1
      %p75 = scmp.eq.s32.totalorder %s16, 1
      %p76 = scmp.ne.s32.totalorder %s71, %s73
      %p77 = scmp.eq.s32.totalorder %s16, 0
      %p78 = por %p76, %p77
      %p79 = scmp.ne.s32.totalorder %s71, %s73
      %p80 = scmp.eq.s32.totalorder %s21, 1
      %p81 = por %p79, %p80
      %p82 = scmp.ne.s32.totalorder %s73, %s74
      %p83 = scmp.eq.s32.totalorder %s21, 0
      %p84 = por %p82, %p83
      %p85 = scmp.ne.s32.totalorder %s73, %s74
      %p86 = scmp.eq.s32.totalorder %s22, 1
      %p87 = por %p85, %p86
      %p89 = scmp.ne.s32.totalorder %s74, %s88
      %p90 = scmp.eq.s32.totalorder %s22, 0
      %p91 = por %p89, %p90
      %s93 = sadd.s32 %s92, 1
      %p96 = scmp.eq.s32.totalorder %s16, 1
      %p97 = scmp.ne.s32.totalorder %s92, %s94
      %p98 = scmp.eq.s32.totalorder %s16, 0
      %p99 = por %p97, %p98
      %p100 = scmp.ne.s32.totalorder %s92, %s94
      %p101 = scmp.eq.s32.totalorder %s21, 1
      %p102 = por %p100, %p101
      %p103 = scmp.ne.s32.totalorder %s94, %s95
      %p104 = scmp.eq.s32.totalorder %s21, 0
      %p105 = por %p103, %p104
      %p106 = scmp.ne.s32.totalorder %s94, %s95
      %p107 = scmp.eq.s32.totalorder %s22, 1
      %p108 = por %p106, %p107
      %p110 = scmp.ne.s32.totalorder %s95, %s109
      %p111 = scmp.eq.s32.totalorder %s22, 0
      %p112 = por %p110, %p111
      %s114 = sadd.s32 %s113, 1
      %p117 = scmp.eq.s32.totalorder %s16, 1
      %p118 = scmp.ne.s32.totalorder %s113, %s115
      %p119 = scmp.eq.s32.totalorder %s16, 0
      %p120 = por %p118, %p119
      %p121 = scmp.ne.s32.totalorder %s113, %s115
      %p122 = scmp.eq.s32.totalorder %s21, 1
      %p123 = por %p121, %p122
      %p124 = scmp.ne.s32.totalorder %s115, %s116
      %p125 = scmp.eq.s32.totalorder %s21, 0
      %p126 = por %p124, %p125
      %p127 = scmp.ne.s32.totalorder %s115, %s116
      %p128 = scmp.eq.s32.totalorder %s22, 1
      %p129 = por %p127, %p128
      %p131 = scmp.ne.s32.totalorder %s116, %s130
      %p132 = scmp.eq.s32.totalorder %s22, 0
      %p133 = por %p131, %p132
      %s135 = sadd.s32 %s134, 1
      %p138 = scmp.eq.s32.totalorder %s16, 1
      %p139 = scmp.ne.s32.totalorder %s134, %s136
      %p140 = scmp.eq.s32.totalorder %s16, 0
      %p141 = por %p139, %p140
      %p142 = scmp.ne.s32.totalorder %s134, %s136
      %p143 = scmp.eq.s32.totalorder %s21, 1
      %p144 = por %p142, %p143
      %p145 = scmp.ne.s32.totalorder %s136, %s137
      %p146 = scmp.eq.s32.totalorder %s21, 0
      %p147 = por %p145, %p146
      %p148 = scmp.ne.s32.totalorder %s136, %s137
      %p149 = scmp.eq.s32.totalorder %s22, 1
      %p150 = por %p148, %p149
      %p152 = scmp.ne.s32.totalorder %s137, %s151
      %p153 = scmp.eq.s32.totalorder %s22, 0
      %p154 = por %p152, %p153
      %s156 = sadd.s32 %s155, 1
      %p159 = scmp.eq.s32.totalorder %s16, 1
      %p160 = scmp.ne.s32.totalorder %s155, %s157
      %p161 = scmp.eq.s32.totalorder %s16, 0
      %p162 = por %p160, %p161
      %p163 = scmp.ne.s32.totalorder %s155, %s157
      %p164 = scmp.eq.s32.totalorder %s21, 1
      %p165 = por %p163, %p164
      %p166 = scmp.ne.s32.totalorder %s157, %s158
      %p167 = scmp.eq.s32.totalorder %s21, 0
      %p168 = por %p166, %p167
      %p169 = scmp.ne.s32.totalorder %s157, %s158
      %p170 = scmp.eq.s32.totalorder %s22, 1
      %p171 = por %p169, %p170
      %p173 = scmp.ne.s32.totalorder %s158, %s172
      %p174 = scmp.eq.s32.totalorder %s22, 0
      %p175 = por %p173, %p174
      %s176 = ssub.s32 %s16, %s23
      %p177 = scmp.eq.s32.totalorder %s176, 0
      %s179 = sadd.s32 %s178, 1
      %s180 = scalar_select %p177, %s178, %s179
      %p183 = pneg %p177
      %p184 = scmp.eq.s32.totalorder %s16, 1
      %p185 = por %p183, %p184
      %p186 = scmp.ne.s32.totalorder %s178, %s181
      %p187 = scmp.eq.s32.totalorder %s16, 0
      %p188 = por %p186, %p187
      %p189 = scmp.ne.s32.totalorder %s178, %s181
      %p190 = scmp.eq.s32.totalorder %s21, 1
      %p191 = por %p189, %p190
      %p192 = scmp.ne.s32.totalorder %s181, %s182
      %p193 = scmp.eq.s32.totalorder %s21, 0
      %p194 = por %p192, %p193
      %p195 = scmp.ne.s32.totalorder %s181, %s182
      %p196 = scmp.eq.s32.totalorder %s22, 1
      %p197 = por %p195, %p196
      %p199 = scmp.ne.s32.totalorder %s182, %s198
      %p200 = scmp.eq.s32.totalorder %s22, 0
      %p201 = por %p199, %p200
      %p202 = scmp.le.s32.totalorder 1, %s16
      %p203 = scmp.lt.s32.totalorder %s16, 3
      %p204 = pnand %p202, %p203
      %p205 = pneg %p204
      // Predicated region
      $region9: #{tpu_custom_call.1} parent=5 // pred_check
        _
      $region10: #{tpu_custom_call.1} parent=5 // pred_check_branch
        %207 = sbr.rel (%p204) target = $region12
      $region11: #{tpu_custom_call.1} parent=5 // pred_region
        %s208 = ssub.s32 %s16, 1
        // Predicated region
        $region13: #{tpu_custom_call.1} parent=11 // pred_check
          %p209 = pneg %p63
        $region14: #{tpu_custom_call.1} parent=11 // pred_check_branch
          %211 = sbr.rel (%p209) target = $region16
        $region15: #{tpu_custom_call.1} parent=11 // pred_region
          _
        $region16: #{tpu_custom_call.1} parent=11 // pred_fallthru
          _
        // Predicated region
        $region17: #{tpu_custom_call.1} parent=11 // pred_check
          %p212 = pneg %p84
        $region18: #{tpu_custom_call.1} parent=11 // pred_check_branch
          %214 = sbr.rel (%p212) target = $region20
        $region19: #{tpu_custom_call.1} parent=11 // pred_region
          _
        $region20: #{tpu_custom_call.1} parent=11 // pred_fallthru
          _
        // Predicated region
        $region21: #{tpu_custom_call.1} parent=11 // pred_check
          %p215 = pneg %p105
        $region22: #{tpu_custom_call.1} parent=11 // pred_check_branch
          %217 = sbr.rel (%p215) target = $region24
        $region23: #{tpu_custom_call.1} parent=11 // pred_region
          _
        $region24: #{tpu_custom_call.1} parent=11 // pred_fallthru
          _
        // Predicated region
        $region25: #{tpu_custom_call.1} parent=11 // pred_check
          %p218 = pneg %p126
        $region26: #{tpu_custom_call.1} parent=11 // pred_check_branch
          %220 = sbr.rel (%p218) target = $region28
        $region27: #{tpu_custom_call.1} parent=11 // pred_region
          _
        $region28: #{tpu_custom_call.1} parent=11 // pred_fallthru
          _
        // Predicated region
        $region29: #{tpu_custom_call.1} parent=11 // pred_check
          %p221 = pneg %p147
        $region30: #{tpu_custom_call.1} parent=11 // pred_check_branch
          %223 = sbr.rel (%p221) target = $region32
        $region31: #{tpu_custom_call.1} parent=11 // pred_region
          _
        $region32: #{tpu_custom_call.1} parent=11 // pred_fallthru
          _
        // Predicated region
        $region33: #{tpu_custom_call.1} parent=11 // pred_check
          %p224 = pneg %p168
        $region34: #{tpu_custom_call.1} parent=11 // pred_check_branch
          %226 = sbr.rel (%p224) target = $region36
        $region35: #{tpu_custom_call.1} parent=11 // pred_region
          _
        $region36: #{tpu_custom_call.1} parent=11 // pred_fallthru
          _
      $region12: #{tpu_custom_call.1} parent=5 // pred_fallthru
        _
      %p227 = scmp.lt.s32.totalorder %s16, 2
      // Predicated region
      $region37: #{tpu_custom_call.1} parent=5 // pred_check
        %p228 = pneg %p227
      $region38: #{tpu_custom_call.1} parent=5 // pred_check_branch
        %230 = sbr.rel (%p228) target = $region40
      $region39: #{tpu_custom_call.1} parent=5 // pred_region
        // Predicated region
        $region41: #{tpu_custom_call.1} parent=39 // pred_check
          %p231 = pneg %p36
        $region42: #{tpu_custom_call.1} parent=39 // pred_check_branch
          %233 = sbr.rel (%p231) target = $region44
        $region43: #{tpu_custom_call.1} parent=39 // pred_region
          %p234 = scmp.lt.s32.totalorder %s16, 1
          %s235 = scalar_select %p234, %s16, 1
          %s236 = smul.addr %s235, 2
          %s237 = smul.addr %s236, 4
          %s238 = scalar_lea.vmem %s0, %s237
        $region44: #{tpu_custom_call.1} parent=39 // pred_fallthru
          _
      $region40: #{tpu_custom_call.1} parent=5 // pred_fallthru
        _
      %p239 = scmp.le.s32.totalorder 1, %s16
      %p240 = scmp.lt.s32.totalorder %s16, 3
      %p241 = pnand %p239, %p240
      %p242 = pneg %p241
      // Predicated region
      $region45: #{tpu_custom_call.1} parent=5 // pred_check
        _
      $region46: #{tpu_custom_call.1} parent=5 // pred_check_branch
        %244 = sbr.rel (%p241) target = $region48
      $region47: #{tpu_custom_call.1} parent=5 // pred_region
        %s245 = ssub.s32 %s16, 1
        %p246 = scmp.lt.s32.totalorder %s21, 1
        %s247 = scalar_select %p246, %s21, 1
        %s248 = smul.addr %s247, 2
        %s249 = smul.addr %s248, 4
        %s250 = scalar_lea.vmem %s0, %s249
        %p251 = pneg %p42
        %p252 = pneg %p39
        %p253 = pneg %p63
        %p254 = pneg %p60
        %p255 = pneg %p84
        %p256 = pneg %p81
        %p257 = pneg %p105
        %p258 = pneg %p102
        %p259 = pneg %p126
        %p260 = pneg %p123
        %p261 = pneg %p147
        %p262 = pneg %p144
        %p263 = pneg %p168
        %p264 = pneg %p165
        %p265 = pneg %p194
        %p266 = pneg %p191
        %s267 = sand.u32 %s181, 1
        %s268 = scalar_lea.sflag [#allocation3], %s267
        %s269 = sand.u32 %s181, 1
        %s270 = smul.addr %s269, 16
        %s271 = scalar_lea.vmem [#allocation2], %s270
        %p272 = scmp.lt.s32.totalorder %s21, 1
        %s273 = scalar_select %p272, %s21, 1
        %s274 = smul.addr %s273, 2
        %s275 = smul.addr %s274, 4
        %s276 = scalar_lea.vmem %s0, %s275
        %v277 = vlaneseq
        %v278 = vand.u32 %v277, 127
        %v279 = vadd.s32 %v278, 128
        %vm280 = vcmp.lt.s32.totalorder %v278, 0
        %v281 = vsub.s32 0, %v278
        %v282 = vsel %vm280, %v281, %v278
        %v283 = vshrl.u32 %v282, 4
        %v284 = vand.u32 %v282, 15
        %v285 = vsub.s32 0, %v284
        %v286 = vsel %vm280, %v285, %v284
        %vm287 = vcmp.lt.s32.totalorder %v279, 0
        %v288 = vsub.s32 0, %v279
        %v289 = vsel %vm287, %v288, %v279
        %v290 = vshrl.u32 %v289, 4
        %v291 = vand.u32 %v289, 15
        %v292 = vsub.s32 0, %v291
        %v293 = vsel %vm287, %v292, %v291
        %vm294 = vcmp.ne.s32.totalorder %v286, 0
        %vm295 = vcmp.ne.s32.totalorder %v293, 0
        %vm296 = vcmp.lt.s32.totalorder %v286, 0
        %vm297 = vcmp.lt.s32.totalorder %v293, 0
        %vm298 = vmand %vm296, %vm294
        %vm299 = vmand %vm297, %vm295
        %v300 = vadd.s32 %v286, 16
        %v301 = vadd.s32 %v293, 16
        %v302 = vsel %vm298, %v300, %v286
        %v303 = vsel %vm299, %v301, %v293
        %vm304 = vcmp.ge.s32.totalorder %v302, 1
        %vm305 = vcmp.ge.s32.totalorder %v303, 1
        %vm306 = vcmp.le.s32.totalorder %v302, 14
        %vm307 = vcmp.le.s32.totalorder %v303, 14
        %v308 = vld [vmem:[%s1] sm:$0xff]
        %s309 = scalar_lea.vmem %s1, 8
        %v310 = vld [vmem:[%s309] sm:$0xff]
        %s311 = scalar_lea.vmem %s1, 16
        %v312 = vld [vmem:[%s311] sm:$0xff]
        %s313 = scalar_lea.vmem %s1, 24
        %v314 = vld [vmem:[%s313] sm:$0xff]
        %s315 = scalar_lea.vmem %s1, 32
        %v316 = vld [vmem:[%s315] sm:$0xff]
        %s317 = scalar_lea.vmem %s1, 40
        %v318 = vld [vmem:[%s317] sm:$0xff]
        %s319 = scalar_lea.vmem %s1, 48
        %v320 = vld [vmem:[%s319] sm:$0xff]
        %s321 = scalar_lea.vmem %s1, 56
        %v322 = vld [vmem:[%s321] sm:$0xff]
        %s323 = scalar_lea.vmem %s1, 64
        %v324 = vld [vmem:[%s323] sm:$0xff]
        %v325 = vld [vmem:[%s4] sm:$0xff]
        %s326 = scalar_lea.vmem %s4, 8
        %v327 = vld [vmem:[%s326] sm:$0xff]
        %s328 = scalar_lea.vmem %s4, 16
        %v329 = vld [vmem:[%s328] sm:$0xff]
        %s330 = scalar_lea.vmem %s4, 24
        %v331 = vld [vmem:[%s330] sm:$0xff]
        %s332 = scalar_lea.vmem %s4, 32
        %v333 = vld [vmem:[%s332] sm:$0xff]
        %s334 = scalar_lea.vmem %s4, 40
        %v335 = vld [vmem:[%s334] sm:$0xff]
        %s336 = scalar_lea.vmem %s4, 48
        %v337 = vld [vmem:[%s336] sm:$0xff]
        %s338 = scalar_lea.vmem %s4, 56
        %v339 = vld [vmem:[%s338] sm:$0xff]
        %s340 = scalar_lea.vmem %s4, 64
        %v341 = vld [vmem:[%s340] sm:$0xff]
        %v342 = vld [vmem:[%s2] sm:$0xff]
        %v343 = vld [vmem:[%s3] sm:$0xff]
        %v344 = vld [vmem:[%s5] sm:$0xff]
        %v345 = vld [vmem:[%s6] sm:$0xff]
        %v346 = vld [vmem:[%s276] sm:$0xff]
        %v348 = vcombine.high %v346, %v346
        %349 = vrot.lane.b32.xlu0 %v346, 17
        %v350 = vpop.permute.xlu0 %349
        %351 = vrot.lane.b32.xlu0 %v348, 17
        %v352 = vpop.permute.xlu0 %351
        %vm353 = vcmask 138240
        %v354 = vsel %vm353, %v350, %v352
        %v358 = vsel %vm353, 0.0, %v350
        %v359 = vsel %vm353, %v352, 0.0
        %v360 = vsel %vm304, 1, 0
        %v361 = vsel %vm305, 1, 0
        %vm362 = vcmp.eq.s32.totalorder %v360, 1
        %vm363 = vcmp.eq.s32.totalorder %v361, 1
        %v364 = vsel %vm362, %v358, 0.0
        %v365 = vsel %vm363, %v354, 0.0
        %368 = vrot.lane.b32.xlu0 %v358, 127
        %v369 = vpop.permute.xlu0 %368
        %370 = vrot.lane.b32.xlu0 %v354, 127
        %v371 = vpop.permute.xlu0 %370
        %372 = vrot.lane.b32.xlu0 %v359, 127
        %v373 = vpop.permute.xlu0 %372
        %vm374 = vcmask 1039360
        %v375 = vsel %vm374, %v369, %v371
        %v376 = vsel %vm374, %v371, %v373
        %vm377 = vcmask 31744
        %v379 = vsel %vm377, %v310, 0
        %vm381 = vcmask 1043456
        %v382 = vsel %vm381, %v375, 0
        %v384 = vsel %vm381, %v376, 0
        %386 = vmatprep.subr.mxu0 %v384
        %387 = vmatpush1.msra.mxu0 %v382
        %388 = vmatprep.subr.mxu0 0.0
        %389 = vmatpush1.msra.mxu0 0.0
        %390 = vmatprep.subr.mxu0 0.0
        %391 = vmatpush1.msra.mxu0 0.0
        %392 = vmatprep.subr.mxu0 0.0
        %393 = vmatpush1.msra.mxu0 0.0
        %394 = vmatprep.subr.mxu0 0.0
        %395 = vmatpush1.msra.mxu0 0.0
        %396 = vmatprep.subr.mxu0 0.0
        %397 = vmatpush1.msra.mxu0 0.0
        %398 = vmatprep.subr.mxu0 0.0
        %399 = vmatpush1.msra.mxu0 0.0
        %400 = vmatprep.subr.mxu0 0.0
        %401 = vmatpush1.msra.mxu0 0.0
        %402 = vmatprep.subr.mxu0 0.0
        %403 = vmatpush1.msra.mxu0 0.0
        %404 = vmatprep.subr.mxu0 0.0
        %405 = vmatpush1.msra.mxu0 0.0
        %406 = vmatprep.subr.mxu0 0.0
        %407 = vmatpush1.msra.mxu0 0.0
        %408 = vmatprep.subr.mxu0 0.0
        %409 = vmatpush1.msra.mxu0 0.0
        %410 = vmatprep.subr.mxu0 0.0
        %411 = vmatpush1.msra.mxu0 0.0
        %412 = vmatprep.subr.mxu0 0.0
        %413 = vmatpush1.msra.mxu0 0.0
        %414 = vmatprep.subr.mxu0 0.0
        %415 = vmatpush1.msra.mxu0 0.0
        %416 = vmatprep.subr.mxu0 0.0
        %417 = vmatpush1.msra.mxu0 0.0
        %418 = vmatprep.subr.mxu0 0.0
        %419 = vmatpush1.msra.mxu0 0.0
        %420 = vmatprep.subr.mxu0 0.0
        %421 = vmatpush1.msra.mxu0 0.0
        %422 = vmatprep.subr.mxu0 0.0
        %423 = vmatpush1.msra.mxu0 0.0
        %424 = vmatprep.subr.mxu0 0.0
        %425 = vmatpush1.msra.mxu0 0.0
        %426 = vmatprep.subr.mxu0 0.0
        %427 = vmatpush1.msra.mxu0 0.0
        %428 = vmatprep.subr.mxu0 0.0
        %429 = vmatpush1.msra.mxu0 0.0
        %430 = vmatprep.subr.mxu0 0.0
        %431 = vmatpush1.msra.mxu0 0.0
        %432 = vmatprep.subr.mxu0 0.0
        %433 = vmatpush1.msra.mxu0 0.0
        %434 = vmatprep.subr.mxu0 0.0
        %435 = vmatpush1.msra.mxu0 0.0
        %436 = vmatprep.subr.mxu0 0.0
        %437 = vmatpush1.msra.mxu0 0.0
        %438 = vmatprep.subr.mxu0 0.0
        %439 = vmatpush1.msra.mxu0 0.0
        %440 = vmatprep.subr.mxu0 0.0
        %441 = vmatpush1.msra.mxu0 0.0
        %442 = vmatprep.subr.mxu0 0.0
        %443 = vmatpush1.msra.mxu0 0.0
        %444 = vmatprep.subr.mxu0 0.0
        %445 = vmatpush1.msra.mxu0 0.0
        %446 = vmatprep.subr.mxu0 0.0
        %447 = vmatpush1.msra.mxu0 0.0
        %448 = vmatprep.subr.mxu0 0.0
        %449 = vmatpush1.msra.mxu0 0.0
        %450 = vmatprep.mubr.f32.mxu0 0.0
        %451 = vmatmul.mubr.f32.gmra.mrb[0].mxu0 %v379
        %v452 = vpop.f32.mrb[0].mxu0
        %v453 = vadd.f32 0.0, %v452
        %v454 = vpop.f32.mrb[0].mxu0
        %v455 = vadd.f32 0.0, %v454
        %456 = vdwg.mxu0
        %v458 = vsel %vm377, %v308, 0
        %v461 = vsel %vm381, %v364, 0
        %v464 = vsel %vm381, %v365, 0
        %466 = vmatprep.subr.mxu0 %v464
        %467 = vmatpush1.msra.mxu0 %v461
        %468 = vmatprep.subr.mxu0 0.0
        %469 = vmatpush1.msra.mxu0 0.0
        %470 = vmatprep.subr.mxu0 0.0
        %471 = vmatpush1.msra.mxu0 0.0
        %472 = vmatprep.subr.mxu0 0.0
        %473 = vmatpush1.msra.mxu0 0.0
        %474 = vmatprep.subr.mxu0 0.0
        %475 = vmatpush1.msra.mxu0 0.0
        %476 = vmatprep.subr.mxu0 0.0
        %477 = vmatpush1.msra.mxu0 0.0
        %478 = vmatprep.subr.mxu0 0.0
        %479 = vmatpush1.msra.mxu0 0.0
        %480 = vmatprep.subr.mxu0 0.0
        %481 = vmatpush1.msra.mxu0 0.0
        %482 = vmatprep.subr.mxu0 0.0
        %483 = vmatpush1.msra.mxu0 0.0
        %484 = vmatprep.subr.mxu0 0.0
        %485 = vmatpush1.msra.mxu0 0.0
        %486 = vmatprep.subr.mxu0 0.0
        %487 = vmatpush1.msra.mxu0 0.0
        %488 = vmatprep.subr.mxu0 0.0
        %489 = vmatpush1.msra.mxu0 0.0
        %490 = vmatprep.subr.mxu0 0.0
        %491 = vmatpush1.msra.mxu0 0.0
        %492 = vmatprep.subr.mxu0 0.0
        %493 = vmatpush1.msra.mxu0 0.0
        %494 = vmatprep.subr.mxu0 0.0
        %495 = vmatpush1.msra.mxu0 0.0
        %496 = vmatprep.subr.mxu0 0.0
        %497 = vmatpush1.msra.mxu0 0.0
        %498 = vmatprep.subr.mxu0 0.0
        %499 = vmatpush1.msra.mxu0 0.0
        %500 = vmatprep.subr.mxu0 0.0
        %501 = vmatpush1.msra.mxu0 0.0
        %502 = vmatprep.subr.mxu0 0.0
        %503 = vmatpush1.msra.mxu0 0.0
        %504 = vmatprep.subr.mxu0 0.0
        %505 = vmatpush1.msra.mxu0 0.0
        %506 = vmatprep.subr.mxu0 0.0
        %507 = vmatpush1.msra.mxu0 0.0
        %508 = vmatprep.subr.mxu0 0.0
        %509 = vmatpush1.msra.mxu0 0.0
        %510 = vmatprep.subr.mxu0 0.0
        %511 = vmatpush1.msra.mxu0 0.0
        %512 = vmatprep.subr.mxu0 0.0
        %513 = vmatpush1.msra.mxu0 0.0
        %514 = vmatprep.subr.mxu0 0.0
        %515 = vmatpush1.msra.mxu0 0.0
        %516 = vmatprep.subr.mxu0 0.0
        %517 = vmatpush1.msra.mxu0 0.0
        %518 = vmatprep.subr.mxu0 0.0
        %519 = vmatpush1.msra.mxu0 0.0
        %520 = vmatprep.subr.mxu0 0.0
        %521 = vmatpush1.msra.mxu0 0.0
        %522 = vmatprep.subr.mxu0 0.0
        %523 = vmatpush1.msra.mxu0 0.0
        %524 = vmatprep.subr.mxu0 0.0
        %525 = vmatpush1.msra.mxu0 0.0
        %526 = vmatprep.subr.mxu0 0.0
        %527 = vmatpush1.msra.mxu0 0.0
        %528 = vmatprep.subr.mxu0 0.0
        %529 = vmatpush1.msra.mxu0 0.0
        %530 = vmatprep.mubr.f32.mxu0 0.0
        %531 = vmatmul.mubr.f32.gmra.mrb[0].mxu0 %v458
        %v532 = vpop.f32.mrb[0].mxu0
        %v533 = vadd.f32 %v453, %v532
        %v534 = vpop.f32.mrb[0].mxu0
        %v535 = vadd.f32 %v455, %v534
        %536 = vdwg.mxu0
        %v537 = vsel %vm306, 1, 0
        %v538 = vsel %vm307, 1, 0
        %vm539 = vcmp.eq.s32.totalorder %v537, 1
        %vm540 = vcmp.eq.s32.totalorder %v538, 1
        %541 = vrot.lane.b32.xlu0 %v358, 126
        %v542 = vpop.permute.xlu0 %541
        %543 = vrot.lane.b32.xlu0 %v354, 126
        %v544 = vpop.permute.xlu0 %543
        %545 = vrot.lane.b32.xlu0 %v359, 126
        %v546 = vpop.permute.xlu0 %545
        %vm547 = vcmask 1031168
        %v548 = vsel %vm547, %v542, %v544
        %v549 = vsel %vm547, %v544, %v546
        %v552 = vsel %vm539, %v548, 0.0
        %v553 = vsel %vm540, %v549, 0.0
        %v555 = vsel %vm377, %v312, 0
        %v558 = vsel %vm381, %v552, 0
        %v561 = vsel %vm381, %v553, 0
        %563 = vmatprep.subr.mxu0 %v561
        %564 = vmatpush1.msra.mxu0 %v558
        %565 = vmatprep.subr.mxu0 0.0
        %566 = vmatpush1.msra.mxu0 0.0
        %567 = vmatprep.subr.mxu0 0.0
        %568 = vmatpush1.msra.mxu0 0.0
        %569 = vmatprep.subr.mxu0 0.0
        %570 = vmatpush1.msra.mxu0 0.0
        %571 = vmatprep.subr.mxu0 0.0
        %572 = vmatpush1.msra.mxu0 0.0
        %573 = vmatprep.subr.mxu0 0.0
        %574 = vmatpush1.msra.mxu0 0.0
        %575 = vmatprep.subr.mxu0 0.0
        %576 = vmatpush1.msra.mxu0 0.0
        %577 = vmatprep.subr.mxu0 0.0
        %578 = vmatpush1.msra.mxu0 0.0
        %579 = vmatprep.subr.mxu0 0.0
        %580 = vmatpush1.msra.mxu0 0.0
        %581 = vmatprep.subr.mxu0 0.0
        %582 = vmatpush1.msra.mxu0 0.0
        %583 = vmatprep.subr.mxu0 0.0
        %584 = vmatpush1.msra.mxu0 0.0
        %585 = vmatprep.subr.mxu0 0.0
        %586 = vmatpush1.msra.mxu0 0.0
        %587 = vmatprep.subr.mxu0 0.0
        %588 = vmatpush1.msra.mxu0 0.0
        %589 = vmatprep.subr.mxu0 0.0
        %590 = vmatpush1.msra.mxu0 0.0
        %591 = vmatprep.subr.mxu0 0.0
        %592 = vmatpush1.msra.mxu0 0.0
        %593 = vmatprep.subr.mxu0 0.0
        %594 = vmatpush1.msra.mxu0 0.0
        %595 = vmatprep.subr.mxu0 0.0
        %596 = vmatpush1.msra.mxu0 0.0
        %597 = vmatprep.subr.mxu0 0.0
        %598 = vmatpush1.msra.mxu0 0.0
        %599 = vmatprep.subr.mxu0 0.0
        %600 = vmatpush1.msra.mxu0 0.0
        %601 = vmatprep.subr.mxu0 0.0
        %602 = vmatpush1.msra.mxu0 0.0
        %603 = vmatprep.subr.mxu0 0.0
        %604 = vmatpush1.msra.mxu0 0.0
        %605 = vmatprep.subr.mxu0 0.0
        %606 = vmatpush1.msra.mxu0 0.0
        %607 = vmatprep.subr.mxu0 0.0
        %608 = vmatpush1.msra.mxu0 0.0
        %609 = vmatprep.subr.mxu0 0.0
        %610 = vmatpush1.msra.mxu0 0.0
        %611 = vmatprep.subr.mxu0 0.0
        %612 = vmatpush1.msra.mxu0 0.0
        %613 = vmatprep.subr.mxu0 0.0
        %614 = vmatpush1.msra.mxu0 0.0
        %615 = vmatprep.subr.mxu0 0.0
        %616 = vmatpush1.msra.mxu0 0.0
        %617 = vmatprep.subr.mxu0 0.0
        %618 = vmatpush1.msra.mxu0 0.0
        %619 = vmatprep.subr.mxu0 0.0
        %620 = vmatpush1.msra.mxu0 0.0
        %621 = vmatprep.subr.mxu0 0.0
        %622 = vmatpush1.msra.mxu0 0.0
        %623 = vmatprep.subr.mxu0 0.0
        %624 = vmatpush1.msra.mxu0 0.0
        %625 = vmatprep.subr.mxu0 0.0
        %626 = vmatpush1.msra.mxu0 0.0
        %627 = vmatprep.mubr.f32.mxu0 0.0
        %628 = vmatmul.mubr.f32.gmra.mrb[0].mxu0 %v555
        %v629 = vpop.f32.mrb[0].mxu0
        %v630 = vadd.f32 0.0, %v629
        %v631 = vpop.f32.mrb[0].mxu0
        %v632 = vadd.f32 0.0, %v631
        %633 = vdwg.mxu0
        %v634 = vadd.f32 %v533, %v630
        %v635 = vadd.f32 %v535, %v632
        %636 = vrot.lane.b32.xlu0 %v358, 112
        %v637 = vpop.permute.xlu0 %636
        %638 = vrot.lane.b32.xlu0 %v354, 112
        %v639 = vpop.permute.xlu0 %638
        %640 = vrot.lane.b32.xlu0 %v359, 112
        %v641 = vpop.permute.xlu0 %640
        %vm642 = vcmask 916480
        %v643 = vsel %vm642, %v637, %v639
        %v644 = vsel %vm642, %v639, %v641
        %v647 = vsel %vm362, %v643, 0.0
        %v648 = vsel %vm363, %v644, 0.0
        %v650 = vsel %vm377, %v314, 0
        %v653 = vsel %vm381, %v647, 0
        %v656 = vsel %vm381, %v648, 0
        %658 = vmatprep.subr.mxu0 %v656
        %659 = vmatpush1.msra.mxu0 %v653
        %660 = vmatprep.subr.mxu0 0.0
        %661 = vmatpush1.msra.mxu0 0.0
        %662 = vmatprep.subr.mxu0 0.0
        %663 = vmatpush1.msra.mxu0 0.0
        %664 = vmatprep.subr.mxu0 0.0
        %665 = vmatpush1.msra.mxu0 0.0
        %666 = vmatprep.subr.mxu0 0.0
        %667 = vmatpush1.msra.mxu0 0.0
        %668 = vmatprep.subr.mxu0 0.0
        %669 = vmatpush1.msra.mxu0 0.0
        %670 = vmatprep.subr.mxu0 0.0
        %671 = vmatpush1.msra.mxu0 0.0
        %672 = vmatprep.subr.mxu0 0.0
        %673 = vmatpush1.msra.mxu0 0.0
        %674 = vmatprep.subr.mxu0 0.0
        %675 = vmatpush1.msra.mxu0 0.0
        %676 = vmatprep.subr.mxu0 0.0
        %677 = vmatpush1.msra.mxu0 0.0
        %678 = vmatprep.subr.mxu0 0.0
        %679 = vmatpush1.msra.mxu0 0.0
        %680 = vmatprep.subr.mxu0 0.0
        %681 = vmatpush1.msra.mxu0 0.0
        %682 = vmatprep.subr.mxu0 0.0
        %683 = vmatpush1.msra.mxu0 0.0
        %684 = vmatprep.subr.mxu0 0.0
        %685 = vmatpush1.msra.mxu0 0.0
        %686 = vmatprep.subr.mxu0 0.0
        %687 = vmatpush1.msra.mxu0 0.0
        %688 = vmatprep.subr.mxu0 0.0
        %689 = vmatpush1.msra.mxu0 0.0
        %690 = vmatprep.subr.mxu0 0.0
        %691 = vmatpush1.msra.mxu0 0.0
        %692 = vmatprep.subr.mxu0 0.0
        %693 = vmatpush1.msra.mxu0 0.0
        %694 = vmatprep.subr.mxu0 0.0
        %695 = vmatpush1.msra.mxu0 0.0
        %696 = vmatprep.subr.mxu0 0.0
        %697 = vmatpush1.msra.mxu0 0.0
        %698 = vmatprep.subr.mxu0 0.0
        %699 = vmatpush1.msra.mxu0 0.0
        %700 = vmatprep.subr.mxu0 0.0
        %701 = vmatpush1.msra.mxu0 0.0
        %702 = vmatprep.subr.mxu0 0.0
        %703 = vmatpush1.msra.mxu0 0.0
        %704 = vmatprep.subr.mxu0 0.0
        %705 = vmatpush1.msra.mxu0 0.0
        %706 = vmatprep.subr.mxu0 0.0
        %707 = vmatpush1.msra.mxu0 0.0
        %708 = vmatprep.subr.mxu0 0.0
        %709 = vmatpush1.msra.mxu0 0.0
        %710 = vmatprep.subr.mxu0 0.0
        %711 = vmatpush1.msra.mxu0 0.0
        %712 = vmatprep.subr.mxu0 0.0
        %713 = vmatpush1.msra.mxu0 0.0
        %714 = vmatprep.subr.mxu0 0.0
        %715 = vmatpush1.msra.mxu0 0.0
        %716 = vmatprep.subr.mxu0 0.0
        %717 = vmatpush1.msra.mxu0 0.0
        %718 = vmatprep.subr.mxu0 0.0
        %719 = vmatpush1.msra.mxu0 0.0
        %720 = vmatprep.subr.mxu0 0.0
        %721 = vmatpush1.msra.mxu0 0.0
        %722 = vmatprep.mubr.f32.mxu0 0.0
        %723 = vmatmul.mubr.f32.gmra.mrb[0].mxu0 %v650
        %v724 = vpop.f32.mrb[0].mxu0
        %v725 = vadd.f32 0.0, %v724
        %v726 = vpop.f32.mrb[0].mxu0
        %v727 = vadd.f32 0.0, %v726
        %728 = vdwg.mxu0
        %v729 = vadd.f32 %v634, %v725
        %v730 = vadd.f32 %v635, %v727
        %v732 = vsel %vm377, %v316, 0
        %v734 = vsel %vm381, %v346, 0
        %v736 = vsel %vm381, %v348, 0
        %738 = vmatprep.subr.mxu0 %v736
        %739 = vmatpush1.msra.mxu0 %v734
        %740 = vmatprep.subr.mxu0 0.0
        %741 = vmatpush1.msra.mxu0 0.0
        %742 = vmatprep.subr.mxu0 0.0
        %743 = vmatpush1.msra.mxu0 0.0
        %744 = vmatprep.subr.mxu0 0.0
        %745 = vmatpush1.msra.mxu0 0.0
        %746 = vmatprep.subr.mxu0 0.0
        %747 = vmatpush1.msra.mxu0 0.0
        %748 = vmatprep.subr.mxu0 0.0
        %749 = vmatpush1.msra.mxu0 0.0
        %750 = vmatprep.subr.mxu0 0.0
        %751 = vmatpush1.msra.mxu0 0.0
        %752 = vmatprep.subr.mxu0 0.0
        %753 = vmatpush1.msra.mxu0 0.0
        %754 = vmatprep.subr.mxu0 0.0
        %755 = vmatpush1.msra.mxu0 0.0
        %756 = vmatprep.subr.mxu0 0.0
        %757 = vmatpush1.msra.mxu0 0.0
        %758 = vmatprep.subr.mxu0 0.0
        %759 = vmatpush1.msra.mxu0 0.0
        %760 = vmatprep.subr.mxu0 0.0
        %761 = vmatpush1.msra.mxu0 0.0
        %762 = vmatprep.subr.mxu0 0.0
        %763 = vmatpush1.msra.mxu0 0.0
        %764 = vmatprep.subr.mxu0 0.0
        %765 = vmatpush1.msra.mxu0 0.0
        %766 = vmatprep.subr.mxu0 0.0
        %767 = vmatpush1.msra.mxu0 0.0
        %768 = vmatprep.subr.mxu0 0.0
        %769 = vmatpush1.msra.mxu0 0.0
        %770 = vmatprep.subr.mxu0 0.0
        %771 = vmatpush1.msra.mxu0 0.0
        %772 = vmatprep.subr.mxu0 0.0
        %773 = vmatpush1.msra.mxu0 0.0
        %774 = vmatprep.subr.mxu0 0.0
        %775 = vmatpush1.msra.mxu0 0.0
        %776 = vmatprep.subr.mxu0 0.0
        %777 = vmatpush1.msra.mxu0 0.0
        %778 = vmatprep.subr.mxu0 0.0
        %779 = vmatpush1.msra.mxu0 0.0
        %780 = vmatprep.subr.mxu0 0.0
        %781 = vmatpush1.msra.mxu0 0.0
        %782 = vmatprep.subr.mxu0 0.0
        %783 = vmatpush1.msra.mxu0 0.0
        %784 = vmatprep.subr.mxu0 0.0
        %785 = vmatpush1.msra.mxu0 0.0
        %786 = vmatprep.subr.mxu0 0.0
        %787 = vmatpush1.msra.mxu0 0.0
        %788 = vmatprep.subr.mxu0 0.0
        %789 = vmatpush1.msra.mxu0 0.0
        %790 = vmatprep.subr.mxu0 0.0
        %791 = vmatpush1.msra.mxu0 0.0
        %792 = vmatprep.subr.mxu0 0.0
        %793 = vmatpush1.msra.mxu0 0.0
        %794 = vmatprep.subr.mxu0 0.0
        %795 = vmatpush1.msra.mxu0 0.0
        %796 = vmatprep.subr.mxu0 0.0
        %797 = vmatpush1.msra.mxu0 0.0
        %798 = vmatprep.subr.mxu0 0.0
        %799 = vmatpush1.msra.mxu0 0.0
        %800 = vmatprep.subr.mxu0 0.0
        %801 = vmatpush1.msra.mxu0 0.0
        %802 = vmatprep.mubr.f32.mxu0 0.0
        %803 = vmatmul.mubr.f32.gmra.mrb[0].mxu0 %v732
        %v804 = vpop.f32.mrb[0].mxu0
        %v805 = vadd.f32 0.0, %v804
        %v806 = vpop.f32.mrb[0].mxu0
        %v807 = vadd.f32 0.0, %v806
        %808 = vdwg.mxu0
        %v809 = vadd.f32 %v729, %v805
        %v810 = vadd.f32 %v730, %v807
        %811 = vrot.lane.b32.xlu0 %v358, 110
        %v812 = vpop.permute.xlu0 %811
        %813 = vrot.lane.b32.xlu0 %v354, 110
        %v814 = vpop.permute.xlu0 %813
        %815 = vrot.lane.b32.xlu0 %v359, 110
        %v816 = vpop.permute.xlu0 %815
        %vm817 = vcmask 900096
        %v818 = vsel %vm817, %v812, %v814
        %v819 = vsel %vm817, %v814, %v816
        %v822 = vsel %vm539, %v818, 0.0
        %v823 = vsel %vm540, %v819, 0.0
        %v825 = vsel %vm377, %v318, 0
        %v828 = vsel %vm381, %v822, 0
        %v831 = vsel %vm381, %v823, 0
        %833 = vmatprep.subr.mxu0 %v831
        %834 = vmatpush1.msra.mxu0 %v828
        %835 = vmatprep.subr.mxu0 0.0
        %836 = vmatpush1.msra.mxu0 0.0
        %837 = vmatprep.subr.mxu0 0.0
        %838 = vmatpush1.msra.mxu0 0.0
        %839 = vmatprep.subr.mxu0 0.0
        %840 = vmatpush1.msra.mxu0 0.0
        %841 = vmatprep.subr.mxu0 0.0
        %842 = vmatpush1.msra.mxu0 0.0
        %843 = vmatprep.subr.mxu0 0.0
        %844 = vmatpush1.msra.mxu0 0.0
        %845 = vmatprep.subr.mxu0 0.0
        %846 = vmatpush1.msra.mxu0 0.0
        %847 = vmatprep.subr.mxu0 0.0
        %848 = vmatpush1.msra.mxu0 0.0
        %849 = vmatprep.subr.mxu0 0.0
        %850 = vmatpush1.msra.mxu0 0.0
        %851 = vmatprep.subr.mxu0 0.0
        %852 = vmatpush1.msra.mxu0 0.0
        %853 = vmatprep.subr.mxu0 0.0
        %854 = vmatpush1.msra.mxu0 0.0
        %855 = vmatprep.subr.mxu0 0.0
        %856 = vmatpush1.msra.mxu0 0.0
        %857 = vmatprep.subr.mxu0 0.0
        %858 = vmatpush1.msra.mxu0 0.0
        %859 = vmatprep.subr.mxu0 0.0
        %860 = vmatpush1.msra.mxu0 0.0
        %861 = vmatprep.subr.mxu0 0.0
        %862 = vmatpush1.msra.mxu0 0.0
        %863 = vmatprep.subr.mxu0 0.0
        %864 = vmatpush1.msra.mxu0 0.0
        %865 = vmatprep.subr.mxu0 0.0
        %866 = vmatpush1.msra.mxu0 0.0
        %867 = vmatprep.subr.mxu0 0.0
        %868 = vmatpush1.msra.mxu0 0.0
        %869 = vmatprep.subr.mxu0 0.0
        %870 = vmatpush1.msra.mxu0 0.0
        %871 = vmatprep.subr.mxu0 0.0
        %872 = vmatpush1.msra.mxu0 0.0
        %873 = vmatprep.subr.mxu0 0.0
        %874 = vmatpush1.msra.mxu0 0.0
        %875 = vmatprep.subr.mxu0 0.0
        %876 = vmatpush1.msra.mxu0 0.0
        %877 = vmatprep.subr.mxu0 0.0
        %878 = vmatpush1.msra.mxu0 0.0
        %879 = vmatprep.subr.mxu0 0.0
        %880 = vmatpush1.msra.mxu0 0.0
        %881 = vmatprep.subr.mxu0 0.0
        %882 = vmatpush1.msra.mxu0 0.0
        %883 = vmatprep.subr.mxu0 0.0
        %884 = vmatpush1.msra.mxu0 0.0
        %885 = vmatprep.subr.mxu0 0.0
        %886 = vmatpush1.msra.mxu0 0.0
        %887 = vmatprep.subr.mxu0 0.0
        %888 = vmatpush1.msra.mxu0 0.0
        %889 = vmatprep.subr.mxu0 0.0
        %890 = vmatpush1.msra.mxu0 0.0
        %891 = vmatprep.subr.mxu0 0.0
        %892 = vmatpush1.msra.mxu0 0.0
        %893 = vmatprep.subr.mxu0 0.0
        %894 = vmatpush1.msra.mxu0 0.0
        %895 = vmatprep.subr.mxu0 0.0
        %896 = vmatpush1.msra.mxu0 0.0
        %897 = vmatprep.mubr.f32.mxu0 0.0
        %898 = vmatmul.mubr.f32.gmra.mrb[0].mxu0 %v825
        %v899 = vpop.f32.mrb[0].mxu0
        %v900 = vadd.f32 0.0, %v899
        %v901 = vpop.f32.mrb[0].mxu0
        %v902 = vadd.f32 0.0, %v901
        %903 = vdwg.mxu0
        %v904 = vadd.f32 %v809, %v900
        %v905 = vadd.f32 %v810, %v902
        %906 = vrot.lane.b32.xlu0 %v358, 96
        %v907 = vpop.permute.xlu0 %906
        %908 = vrot.lane.b32.xlu0 %v354, 96
        %v909 = vpop.permute.xlu0 %908
        %910 = vrot.lane.b32.xlu0 %v359, 96
        %v911 = vpop.permute.xlu0 %910
        %vm912 = vcmask 785408
        %v913 = vsel %vm912, %v907, %v909
        %v914 = vsel %vm912, %v909, %v911
        %v917 = vsel %vm362, %v913, 0.0
        %v918 = vsel %vm363, %v914, 0.0
        %v920 = vsel %vm377, %v320, 0
        %v923 = vsel %vm381, %v917, 0
        %v926 = vsel %vm381, %v918, 0
        %928 = vmatprep.subr.mxu0 %v926
        %929 = vmatpush1.msra.mxu0 %v923
        %930 = vmatprep.subr.mxu0 0.0
        %931 = vmatpush1.msra.mxu0 0.0
        %932 = vmatprep.subr.mxu0 0.0
        %933 = vmatpush1.msra.mxu0 0.0
        %934 = vmatprep.subr.mxu0 0.0
        %935 = vmatpush1.msra.mxu0 0.0
        %936 = vmatprep.subr.mxu0 0.0
        %937 = vmatpush1.msra.mxu0 0.0
        %938 = vmatprep.subr.mxu0 0.0
        %939 = vmatpush1.msra.mxu0 0.0
        %940 = vmatprep.subr.mxu0 0.0
        %941 = vmatpush1.msra.mxu0 0.0
        %942 = vmatprep.subr.mxu0 0.0
        %943 = vmatpush1.msra.mxu0 0.0
        %944 = vmatprep.subr.mxu0 0.0
        %945 = vmatpush1.msra.mxu0 0.0
        %946 = vmatprep.subr.mxu0 0.0
        %947 = vmatpush1.msra.mxu0 0.0
        %948 = vmatprep.subr.mxu0 0.0
        %949 = vmatpush1.msra.mxu0 0.0
        %950 = vmatprep.subr.mxu0 0.0
        %951 = vmatpush1.msra.mxu0 0.0
        %952 = vmatprep.subr.mxu0 0.0
        %953 = vmatpush1.msra.mxu0 0.0
        %954 = vmatprep.subr.mxu0 0.0
        %955 = vmatpush1.msra.mxu0 0.0
        %956 = vmatprep.subr.mxu0 0.0
        %957 = vmatpush1.msra.mxu0 0.0
        %958 = vmatprep.subr.mxu0 0.0
        %959 = vmatpush1.msra.mxu0 0.0
        %960 = vmatprep.subr.mxu0 0.0
        %961 = vmatpush1.msra.mxu0 0.0
        %962 = vmatprep.subr.mxu0 0.0
        %963 = vmatpush1.msra.mxu0 0.0
        %964 = vmatprep.subr.mxu0 0.0
        %965 = vmatpush1.msra.mxu0 0.0
        %966 = vmatprep.subr.mxu0 0.0
        %967 = vmatpush1.msra.mxu0 0.0
        %968 = vmatprep.subr.mxu0 0.0
        %969 = vmatpush1.msra.mxu0 0.0
        %970 = vmatprep.subr.mxu0 0.0
        %971 = vmatpush1.msra.mxu0 0.0
        %972 = vmatprep.subr.mxu0 0.0
        %973 = vmatpush1.msra.mxu0 0.0
        %974 = vmatprep.subr.mxu0 0.0
        %975 = vmatpush1.msra.mxu0 0.0
        %976 = vmatprep.subr.mxu0 0.0
        %977 = vmatpush1.msra.mxu0 0.0
        %978 = vmatprep.subr.mxu0 0.0
        %979 = vmatpush1.msra.mxu0 0.0
        %980 = vmatprep.subr.mxu0 0.0
        %981 = vmatpush1.msra.mxu0 0.0
        %982 = vmatprep.subr.mxu0 0.0
        %983 = vmatpush1.msra.mxu0 0.0
        %984 = vmatprep.subr.mxu0 0.0
        %985 = vmatpush1.msra.mxu0 0.0
        %986 = vmatprep.subr.mxu0 0.0
        %987 = vmatpush1.msra.mxu0 0.0
        %988 = vmatprep.subr.mxu0 0.0
        %989 = vmatpush1.msra.mxu0 0.0
        %990 = vmatprep.subr.mxu0 0.0
        %991 = vmatpush1.msra.mxu0 0.0
        %992 = vmatprep.mubr.f32.mxu0 0.0
        %993 = vmatmul.mubr.f32.gmra.mrb[0].mxu0 %v920
        %v994 = vpop.f32.mrb[0].mxu0
        %v995 = vadd.f32 0.0, %v994
        %v996 = vpop.f32.mrb[0].mxu0
        %v997 = vadd.f32 0.0, %v996
        %998 = vdwg.mxu0
        %v999 = vadd.f32 %v904, %v995
        %v1000 = vadd.f32 %v905, %v997
        %1001 = vrot.lane.b32.xlu0 %v358, 95
        %v1002 = vpop.permute.xlu0 %1001
        %1003 = vrot.lane.b32.xlu0 %v354, 95
        %v1004 = vpop.permute.xlu0 %1003
        %1005 = vrot.lane.b32.xlu0 %v359, 95
        %v1006 = vpop.permute.xlu0 %1005
        %vm1007 = vcmask 777216
        %v1008 = vsel %vm1007, %v1002, %v1004
        %v1009 = vsel %vm1007, %v1004, %v1006
        %v1011 = vsel %vm377, %v322, 0
        %v1013 = vsel %vm381, %v1008, 0
        %v1015 = vsel %vm381, %v1009, 0
        %1017 = vmatprep.subr.mxu0 %v1015
        %1018 = vmatpush1.msra.mxu0 %v1013
        %1019 = vmatprep.subr.mxu0 0.0
        %1020 = vmatpush1.msra.mxu0 0.0
        %1021 = vmatprep.subr.mxu0 0.0
        %1022 = vmatpush1.msra.mxu0 0.0
        %1023 = vmatprep.subr.mxu0 0.0
        %1024 = vmatpush1.msra.mxu0 0.0
        %1025 = vmatprep.subr.mxu0 0.0
        %1026 = vmatpush1.msra.mxu0 0.0
        %1027 = vmatprep.subr.mxu0 0.0
        %1028 = vmatpush1.msra.mxu0 0.0
        %1029 = vmatprep.subr.mxu0 0.0
        %1030 = vmatpush1.msra.mxu0 0.0
        %1031 = vmatprep.subr.mxu0 0.0
        %1032 = vmatpush1.msra.mxu0 0.0
        %1033 = vmatprep.subr.mxu0 0.0
        %1034 = vmatpush1.msra.mxu0 0.0
        %1035 = vmatprep.subr.mxu0 0.0
        %1036 = vmatpush1.msra.mxu0 0.0
        %1037 = vmatprep.subr.mxu0 0.0
        %1038 = vmatpush1.msra.mxu0 0.0
        %1039 = vmatprep.subr.mxu0 0.0
        %1040 = vmatpush1.msra.mxu0 0.0
        %1041 = vmatprep.subr.mxu0 0.0
        %1042 = vmatpush1.msra.mxu0 0.0
        %1043 = vmatprep.subr.mxu0 0.0
        %1044 = vmatpush1.msra.mxu0 0.0
        %1045 = vmatprep.subr.mxu0 0.0
        %1046 = vmatpush1.msra.mxu0 0.0
        %1047 = vmatprep.subr.mxu0 0.0
        %1048 = vmatpush1.msra.mxu0 0.0
        %1049 = vmatprep.subr.mxu0 0.0
        %1050 = vmatpush1.msra.mxu0 0.0
        %1051 = vmatprep.subr.mxu0 0.0
        %1052 = vmatpush1.msra.mxu0 0.0
        %1053 = vmatprep.subr.mxu0 0.0
        %1054 = vmatpush1.msra.mxu0 0.0
        %1055 = vmatprep.subr.mxu0 0.0
        %1056 = vmatpush1.msra.mxu0 0.0
        %1057 = vmatprep.subr.mxu0 0.0
        %1058 = vmatpush1.msra.mxu0 0.0
        %1059 = vmatprep.subr.mxu0 0.0
        %1060 = vmatpush1.msra.mxu0 0.0
        %1061 = vmatprep.subr.mxu0 0.0
        %1062 = vmatpush1.msra.mxu0 0.0
        %1063 = vmatprep.subr.mxu0 0.0
        %1064 = vmatpush1.msra.mxu0 0.0
        %1065 = vmatprep.subr.mxu0 0.0
        %1066 = vmatpush1.msra.mxu0 0.0
        %1067 = vmatprep.subr.mxu0 0.0
        %1068 = vmatpush1.msra.mxu0 0.0
        %1069 = vmatprep.subr.mxu0 0.0
        %1070 = vmatpush1.msra.mxu0 0.0
        %1071 = vmatprep.subr.mxu0 0.0
        %1072 = vmatpush1.msra.mxu0 0.0
        %1073 = vmatprep.subr.mxu0 0.0
        %1074 = vmatpush1.msra.mxu0 0.0
        %1075 = vmatprep.subr.mxu0 0.0
        %1076 = vmatpush1.msra.mxu0 0.0
        %1077 = vmatprep.subr.mxu0 0.0
        %1078 = vmatpush1.msra.mxu0 0.0
        %1079 = vmatprep.subr.mxu0 0.0
        %1080 = vmatpush1.msra.mxu0 0.0
        %1081 = vmatprep.mubr.f32.mxu0 0.0
        %1082 = vmatmul.mubr.f32.gmra.mrb[0].mxu0 %v1011
        %v1083 = vpop.f32.mrb[0].mxu0
        %v1084 = vadd.f32 0.0, %v1083
        %v1085 = vpop.f32.mrb[0].mxu0
        %v1086 = vadd.f32 0.0, %v1085
        %1087 = vdwg.mxu0
        %v1088 = vadd.f32 %v999, %v1084
        %v1089 = vadd.f32 %v1000, %v1086
        %1090 = vrot.lane.b32.xlu0 %v358, 94
        %v1091 = vpop.permute.xlu0 %1090
        %1092 = vrot.lane.b32.xlu0 %v354, 94
        %v1093 = vpop.permute.xlu0 %1092
        %1094 = vrot.lane.b32.xlu0 %v359, 94
        %v1095 = vpop.permute.xlu0 %1094
        %vm1096 = vcmask 769024
        %v1097 = vsel %vm1096, %v1091, %v1093
        %v1098 = vsel %vm1096, %v1093, %v1095
        %v1101 = vsel %vm539, %v1097, 0.0
        %v1102 = vsel %vm540, %v1098, 0.0
        %v1104 = vsel %vm377, %v324, 0
        %v1107 = vsel %vm381, %v1101, 0
        %v1110 = vsel %vm381, %v1102, 0
        %1112 = vmatprep.subr.mxu0 %v1110
        %1113 = vmatpush1.msra.mxu0 %v1107
        %1114 = vmatprep.subr.mxu0 0.0
        %1115 = vmatpush1.msra.mxu0 0.0
        %1116 = vmatprep.subr.mxu0 0.0
        %1117 = vmatpush1.msra.mxu0 0.0
        %1118 = vmatprep.subr.mxu0 0.0
        %1119 = vmatpush1.msra.mxu0 0.0
        %1120 = vmatprep.subr.mxu0 0.0
        %1121 = vmatpush1.msra.mxu0 0.0
        %1122 = vmatprep.subr.mxu0 0.0
        %1123 = vmatpush1.msra.mxu0 0.0
        %1124 = vmatprep.subr.mxu0 0.0
        %1125 = vmatpush1.msra.mxu0 0.0
        %1126 = vmatprep.subr.mxu0 0.0
        %1127 = vmatpush1.msra.mxu0 0.0
        %1128 = vmatprep.subr.mxu0 0.0
        %1129 = vmatpush1.msra.mxu0 0.0
        %1130 = vmatprep.subr.mxu0 0.0
        %1131 = vmatpush1.msra.mxu0 0.0
        %1132 = vmatprep.subr.mxu0 0.0
        %1133 = vmatpush1.msra.mxu0 0.0
        %1134 = vmatprep.subr.mxu0 0.0
        %1135 = vmatpush1.msra.mxu0 0.0
        %1136 = vmatprep.subr.mxu0 0.0
        %1137 = vmatpush1.msra.mxu0 0.0
        %1138 = vmatprep.subr.mxu0 0.0
        %1139 = vmatpush1.msra.mxu0 0.0
        %1140 = vmatprep.subr.mxu0 0.0
        %1141 = vmatpush1.msra.mxu0 0.0
        %1142 = vmatprep.subr.mxu0 0.0
        %1143 = vmatpush1.msra.mxu0 0.0
        %1144 = vmatprep.subr.mxu0 0.0
        %1145 = vmatpush1.msra.mxu0 0.0
        %1146 = vmatprep.subr.mxu0 0.0
        %1147 = vmatpush1.msra.mxu0 0.0
        %1148 = vmatprep.subr.mxu0 0.0
        %1149 = vmatpush1.msra.mxu0 0.0
        %1150 = vmatprep.subr.mxu0 0.0
        %1151 = vmatpush1.msra.mxu0 0.0
        %1152 = vmatprep.subr.mxu0 0.0
        %1153 = vmatpush1.msra.mxu0 0.0
        %1154 = vmatprep.subr.mxu0 0.0
        %1155 = vmatpush1.msra.mxu0 0.0
        %1156 = vmatprep.subr.mxu0 0.0
        %1157 = vmatpush1.msra.mxu0 0.0
        %1158 = vmatprep.subr.mxu0 0.0
        %1159 = vmatpush1.msra.mxu0 0.0
        %1160 = vmatprep.subr.mxu0 0.0
        %1161 = vmatpush1.msra.mxu0 0.0
        %1162 = vmatprep.subr.mxu0 0.0
        %1163 = vmatpush1.msra.mxu0 0.0
        %1164 = vmatprep.subr.mxu0 0.0
        %1165 = vmatpush1.msra.mxu0 0.0
        %1166 = vmatprep.subr.mxu0 0.0
        %1167 = vmatpush1.msra.mxu0 0.0
        %1168 = vmatprep.subr.mxu0 0.0
        %1169 = vmatpush1.msra.mxu0 0.0
        %1170 = vmatprep.subr.mxu0 0.0
        %1171 = vmatpush1.msra.mxu0 0.0
        %1172 = vmatprep.subr.mxu0 0.0
        %1173 = vmatpush1.msra.mxu0 0.0
        %1174 = vmatprep.subr.mxu0 0.0
        %1175 = vmatpush1.msra.mxu0 0.0
        %1176 = vmatprep.mubr.f32.mxu0 0.0
        %1177 = vmatmul.mubr.f32.gmra.mrb[0].mxu0 %v1104
        %v1178 = vpop.f32.mrb[0].mxu0
        %v1179 = vadd.f32 0.0, %v1178
        %v1180 = vpop.f32.mrb[0].mxu0
        %v1181 = vadd.f32 0.0, %v1180
        %1182 = vdwg.mxu0
        %v1183 = vadd.f32 %v1088, %v1179
        %v1184 = vadd.f32 %v1089, %v1181
        %v1185 = vadd.f32 %v1183, %v1184
        %1186 = vadd.xlane.f32.xlu0 %v1185
        %v1187 = vpop.xlane.xlu0 %1186
        %v1188 = vrot.slane %v1187, 4
        %v1189 = vadd.f32 %v1187, %v1188
        %v1190 = vrot.slane %v1189, 2
        %v1191 = vadd.f32 %v1189, %v1190
        %v1192 = vrot.slane %v1191, 1
        %v1193 = vadd.f32 %v1191, %v1192
        %s1194 = vtos %v1193
        %s1195 = smul.f32 %s1194, 0.00048828125
        %v1196 = vstv %s1195
        %v1197 = vsub.f32 %v1183, %v1196
        %v1198 = vsub.f32 %v1184, %v1196
        %v1199 = vmul.f32 %v1197, %v1197
        %v1200 = vmul.f32 %v1198, %v1198
        %v1201 = vadd.f32 %v1199, %v1200
        %1202 = vadd.xlane.f32.xlu0 %v1201
        %v1203 = vpop.xlane.xlu0 %1202
        %v1204 = vrot.slane %v1203, 4
        %v1205 = vadd.f32 %v1203, %v1204
        %v1206 = vrot.slane %v1205, 2
        %v1207 = vadd.f32 %v1205, %v1206
        %v1208 = vrot.slane %v1207, 1
        %v1209 = vadd.f32 %v1207, %v1208
        %s1210 = vtos %v1209
        %s1211 = smul.f32 %s1210, 0.00048828125
        %s1212 = sadd.f32 %s1211, 1e-05
        %v1213 = vstv %s1212
        %v1214 = vrsqrt.pop %v1213
        %s1215 = vtos %v1214
        %v1216 = vstv %s1215
        %v1217 = vmul.f32 %v1197, %v1216
        %v1218 = vmul.f32 %v1198, %v1216
        %1220 = vset.pattern.permute.xlu0 0
        %1221 = vperm.xlu0 %1220, %v342
        %v1222 = vpop.permute.xlu0 %1221
        %v1224 = vmul.f32 %v1217, %v1222
        %v1225 = vmul.f32 %v1218, %v1222
        %1227 = vset.pattern.permute.xlu0 0
        %1228 = vperm.xlu0 %1227, %v343
        %v1229 = vpop.permute.xlu0 %1228
        %v1231 = vadd.f32 %v1224, %v1229
        %v1232 = vadd.f32 %v1225, %v1229
        %v1233 = vmul.f32 %v1231, 0.5
        %v1234 = vmul.f32 %v1232, 0.5
        %v1235 = vmul.f32 %v1231, 0.70710677
        %v1236 = vmul.f32 %v1232, 0.70710677
        %v1237 = verf.f32.pop %v1235
        %v1238 = verf.f32.pop %v1236
        %v1239 = vadd.f32 %v1237, 1.0
        %v1240 = vadd.f32 %v1238, 1.0
        %v1241 = vmul.f32 %v1233, %v1239
        %v1242 = vmul.f32 %v1234, %v1240
        %1245 = vrot.lane.b32.xlu0 %v1241, 17
        %v1246 = vpop.permute.xlu0 %1245
        %1247 = vrot.lane.b32.xlu0 %v1242, 17
        %v1248 = vpop.permute.xlu0 %1247
        %v1249 = vsel %vm353, %v1246, %v1248
        %v1253 = vsel %vm353, 0.0, %v1246
        %v1254 = vsel %vm353, %v1248, 0.0
        %v1255 = vsel %vm362, %v1253, 0.0
        %v1256 = vsel %vm363, %v1249, 0.0
        %1259 = vrot.lane.b32.xlu0 %v1253, 127
        %v1260 = vpop.permute.xlu0 %1259
        %1261 = vrot.lane.b32.xlu0 %v1249, 127
        %v1262 = vpop.permute.xlu0 %1261
        %1263 = vrot.lane.b32.xlu0 %v1254, 127
        %v1264 = vpop.permute.xlu0 %1263
        %v1265 = vsel %vm374, %v1260, %v1262
        %v1266 = vsel %vm374, %v1262, %v1264
        %vm1269 = vcmask 64512
        %v1271 = vsel %vm1269, %v327, 0
        %1273 = vmatprep.subr.mxu0 %v1266
        %1274 = vmatpush1.msra.mxu0 %v1265
        %1275 = vmatprep.subr.mxu0 0.0
        %1276 = vmatpush1.msra.mxu0 0.0
        %1277 = vmatprep.subr.mxu0 0.0
        %1278 = vmatpush1.msra.mxu0 0.0
        %1279 = vmatprep.subr.mxu0 0.0
        %1280 = vmatpush1.msra.mxu0 0.0
        %1281 = vmatprep.subr.mxu0 0.0
        %1282 = vmatpush1.msra.mxu0 0.0
        %1283 = vmatprep.subr.mxu0 0.0
        %1284 = vmatpush1.msra.mxu0 0.0
        %1285 = vmatprep.subr.mxu0 0.0
        %1286 = vmatpush1.msra.mxu0 0.0
        %1287 = vmatprep.subr.mxu0 0.0
        %1288 = vmatpush1.msra.mxu0 0.0
        %1289 = vmatprep.subr.mxu0 0.0
        %1290 = vmatpush1.msra.mxu0 0.0
        %1291 = vmatprep.subr.mxu0 0.0
        %1292 = vmatpush1.msra.mxu0 0.0
        %1293 = vmatprep.subr.mxu0 0.0
        %1294 = vmatpush1.msra.mxu0 0.0
        %1295 = vmatprep.subr.mxu0 0.0
        %1296 = vmatpush1.msra.mxu0 0.0
        %1297 = vmatprep.subr.mxu0 0.0
        %1298 = vmatpush1.msra.mxu0 0.0
        %1299 = vmatprep.subr.mxu0 0.0
        %1300 = vmatpush1.msra.mxu0 0.0
        %1301 = vmatprep.subr.mxu0 0.0
        %1302 = vmatpush1.msra.mxu0 0.0
        %1303 = vmatprep.subr.mxu0 0.0
        %1304 = vmatpush1.msra.mxu0 0.0
        %1305 = vmatprep.subr.mxu0 0.0
        %1306 = vmatpush1.msra.mxu0 0.0
        %1307 = vmatprep.subr.mxu0 0.0
        %1308 = vmatpush1.msra.mxu0 0.0
        %1309 = vmatprep.subr.mxu0 0.0
        %1310 = vmatpush1.msra.mxu0 0.0
        %1311 = vmatprep.subr.mxu0 0.0
        %1312 = vmatpush1.msra.mxu0 0.0
        %1313 = vmatprep.subr.mxu0 0.0
        %1314 = vmatpush1.msra.mxu0 0.0
        %1315 = vmatprep.subr.mxu0 0.0
        %1316 = vmatpush1.msra.mxu0 0.0
        %1317 = vmatprep.subr.mxu0 0.0
        %1318 = vmatpush1.msra.mxu0 0.0
        %1319 = vmatprep.subr.mxu0 0.0
        %1320 = vmatpush1.msra.mxu0 0.0
        %1321 = vmatprep.subr.mxu0 0.0
        %1322 = vmatpush1.msra.mxu0 0.0
        %1323 = vmatprep.subr.mxu0 0.0
        %1324 = vmatpush1.msra.mxu0 0.0
        %1325 = vmatprep.subr.mxu0 0.0
        %1326 = vmatpush1.msra.mxu0 0.0
        %1327 = vmatprep.subr.mxu0 0.0
        %1328 = vmatpush1.msra.mxu0 0.0
        %1329 = vmatprep.subr.mxu0 0.0
        %1330 = vmatpush1.msra.mxu0 0.0
        %1331 = vmatprep.subr.mxu0 0.0
        %1332 = vmatpush1.msra.mxu0 0.0
        %1333 = vmatprep.subr.mxu0 0.0
        %1334 = vmatpush1.msra.mxu0 0.0
        %1335 = vmatprep.subr.mxu0 0.0
        %1336 = vmatpush1.msra.mxu0 0.0
        %1337 = vmatprep.mubr.f32.mxu0 0.0
        %1338 = vmatmul.mubr.f32.gmra.mrb[0].mxu0 %v1271
        %v1339 = vpop.f32.mrb[0].mxu0
        %v1340 = vadd.f32 0.0, %v1339
        %v1341 = vpop.f32.mrb[0].mxu0
        %v1342 = vadd.f32 0.0, %v1341
        %1343 = vdwg.mxu0
        %v1345 = vsel %vm1269, %v325, 0
        %1347 = vmatprep.subr.mxu0 %v1256
        %1348 = vmatpush1.msra.mxu0 %v1255
        %1349 = vmatprep.subr.mxu0 0.0
        %1350 = vmatpush1.msra.mxu0 0.0
        %1351 = vmatprep.subr.mxu0 0.0
        %1352 = vmatpush1.msra.mxu0 0.0
        %1353 = vmatprep.subr.mxu0 0.0
        %1354 = vmatpush1.msra.mxu0 0.0
        %1355 = vmatprep.subr.mxu0 0.0
        %1356 = vmatpush1.msra.mxu0 0.0
        %1357 = vmatprep.subr.mxu0 0.0
        %1358 = vmatpush1.msra.mxu0 0.0
        %1359 = vmatprep.subr.mxu0 0.0
        %1360 = vmatpush1.msra.mxu0 0.0
        %1361 = vmatprep.subr.mxu0 0.0
        %1362 = vmatpush1.msra.mxu0 0.0
        %1363 = vmatprep.subr.mxu0 0.0
        %1364 = vmatpush1.msra.mxu0 0.0
        %1365 = vmatprep.subr.mxu0 0.0
        %1366 = vmatpush1.msra.mxu0 0.0
        %1367 = vmatprep.subr.mxu0 0.0
        %1368 = vmatpush1.msra.mxu0 0.0
        %1369 = vmatprep.subr.mxu0 0.0
        %1370 = vmatpush1.msra.mxu0 0.0
        %1371 = vmatprep.subr.mxu0 0.0
        %1372 = vmatpush1.msra.mxu0 0.0
        %1373 = vmatprep.subr.mxu0 0.0
        %1374 = vmatpush1.msra.mxu0 0.0
        %1375 = vmatprep.subr.mxu0 0.0
        %1376 = vmatpush1.msra.mxu0 0.0
        %1377 = vmatprep.subr.mxu0 0.0
        %1378 = vmatpush1.msra.mxu0 0.0
        %1379 = vmatprep.subr.mxu0 0.0
        %1380 = vmatpush1.msra.mxu0 0.0
        %1381 = vmatprep.subr.mxu0 0.0
        %1382 = vmatpush1.msra.mxu0 0.0
        %1383 = vmatprep.subr.mxu0 0.0
        %1384 = vmatpush1.msra.mxu0 0.0
        %1385 = vmatprep.subr.mxu0 0.0
        %1386 = vmatpush1.msra.mxu0 0.0
        %1387 = vmatprep.subr.mxu0 0.0
        %1388 = vmatpush1.msra.mxu0 0.0
        %1389 = vmatprep.subr.mxu0 0.0
        %1390 = vmatpush1.msra.mxu0 0.0
        %1391 = vmatprep.subr.mxu0 0.0
        %1392 = vmatpush1.msra.mxu0 0.0
        %1393 = vmatprep.subr.mxu0 0.0
        %1394 = vmatpush1.msra.mxu0 0.0
        %1395 = vmatprep.subr.mxu0 0.0
        %1396 = vmatpush1.msra.mxu0 0.0
        %1397 = vmatprep.subr.mxu0 0.0
        %1398 = vmatpush1.msra.mxu0 0.0
        %1399 = vmatprep.subr.mxu0 0.0
        %1400 = vmatpush1.msra.mxu0 0.0
        %1401 = vmatprep.subr.mxu0 0.0
        %1402 = vmatpush1.msra.mxu0 0.0
        %1403 = vmatprep.subr.mxu0 0.0
        %1404 = vmatpush1.msra.mxu0 0.0
        %1405 = vmatprep.subr.mxu0 0.0
        %1406 = vmatpush1.msra.mxu0 0.0
        %1407 = vmatprep.subr.mxu0 0.0
        %1408 = vmatpush1.msra.mxu0 0.0
        %1409 = vmatprep.subr.mxu0 0.0
        %1410 = vmatpush1.msra.mxu0 0.0
        %1411 = vmatprep.mubr.f32.mxu0 0.0
        %1412 = vmatmul.mubr.f32.gmra.mrb[0].mxu0 %v1345
        %v1413 = vpop.f32.mrb[0].mxu0
        %v1414 = vadd.f32 %v1340, %v1413
        %v1415 = vpop.f32.mrb[0].mxu0
        %v1416 = vadd.f32 %v1342, %v1415
        %1417 = vdwg.mxu0
        %1418 = vrot.lane.b32.xlu0 %v1253, 126
        %v1419 = vpop.permute.xlu0 %1418
        %1420 = vrot.lane.b32.xlu0 %v1249, 126
        %v1421 = vpop.permute.xlu0 %1420
        %1422 = vrot.lane.b32.xlu0 %v1254, 126
        %v1423 = vpop.permute.xlu0 %1422
        %v1424 = vsel %vm547, %v1419, %v1421
        %v1425 = vsel %vm547, %v1421, %v1423
        %v1428 = vsel %vm539, %v1424, 0.0
        %v1429 = vsel %vm540, %v1425, 0.0
        %v1431 = vsel %vm1269, %v329, 0
        %1433 = vmatprep.subr.mxu0 %v1429
        %1434 = vmatpush1.msra.mxu0 %v1428
        %1435 = vmatprep.subr.mxu0 0.0
        %1436 = vmatpush1.msra.mxu0 0.0
        %1437 = vmatprep.subr.mxu0 0.0
        %1438 = vmatpush1.msra.mxu0 0.0
        %1439 = vmatprep.subr.mxu0 0.0
        %1440 = vmatpush1.msra.mxu0 0.0
        %1441 = vmatprep.subr.mxu0 0.0
        %1442 = vmatpush1.msra.mxu0 0.0
        %1443 = vmatprep.subr.mxu0 0.0
        %1444 = vmatpush1.msra.mxu0 0.0
        %1445 = vmatprep.subr.mxu0 0.0
        %1446 = vmatpush1.msra.mxu0 0.0
        %1447 = vmatprep.subr.mxu0 0.0
        %1448 = vmatpush1.msra.mxu0 0.0
        %1449 = vmatprep.subr.mxu0 0.0
        %1450 = vmatpush1.msra.mxu0 0.0
        %1451 = vmatprep.subr.mxu0 0.0
        %1452 = vmatpush1.msra.mxu0 0.0
        %1453 = vmatprep.subr.mxu0 0.0
        %1454 = vmatpush1.msra.mxu0 0.0
        %1455 = vmatprep.subr.mxu0 0.0
        %1456 = vmatpush1.msra.mxu0 0.0
        %1457 = vmatprep.subr.mxu0 0.0
        %1458 = vmatpush1.msra.mxu0 0.0
        %1459 = vmatprep.subr.mxu0 0.0
        %1460 = vmatpush1.msra.mxu0 0.0
        %1461 = vmatprep.subr.mxu0 0.0
        %1462 = vmatpush1.msra.mxu0 0.0
        %1463 = vmatprep.subr.mxu0 0.0
        %1464 = vmatpush1.msra.mxu0 0.0
        %1465 = vmatprep.subr.mxu0 0.0
        %1466 = vmatpush1.msra.mxu0 0.0
        %1467 = vmatprep.subr.mxu0 0.0
        %1468 = vmatpush1.msra.mxu0 0.0
        %1469 = vmatprep.subr.mxu0 0.0
        %1470 = vmatpush1.msra.mxu0 0.0
        %1471 = vmatprep.subr.mxu0 0.0
        %1472 = vmatpush1.msra.mxu0 0.0
        %1473 = vmatprep.subr.mxu0 0.0
        %1474 = vmatpush1.msra.mxu0 0.0
        %1475 = vmatprep.subr.mxu0 0.0
        %1476 = vmatpush1.msra.mxu0 0.0
        %1477 = vmatprep.subr.mxu0 0.0
        %1478 = vmatpush1.msra.mxu0 0.0
        %1479 = vmatprep.subr.mxu0 0.0
        %1480 = vmatpush1.msra.mxu0 0.0
        %1481 = vmatprep.subr.mxu0 0.0
        %1482 = vmatpush1.msra.mxu0 0.0
        %1483 = vmatprep.subr.mxu0 0.0
        %1484 = vmatpush1.msra.mxu0 0.0
        %1485 = vmatprep.subr.mxu0 0.0
        %1486 = vmatpush1.msra.mxu0 0.0
        %1487 = vmatprep.subr.mxu0 0.0
        %1488 = vmatpush1.msra.mxu0 0.0
        %1489 = vmatprep.subr.mxu0 0.0
        %1490 = vmatpush1.msra.mxu0 0.0
        %1491 = vmatprep.subr.mxu0 0.0
        %1492 = vmatpush1.msra.mxu0 0.0
        %1493 = vmatprep.subr.mxu0 0.0
        %1494 = vmatpush1.msra.mxu0 0.0
        %1495 = vmatprep.subr.mxu0 0.0
        %1496 = vmatpush1.msra.mxu0 0.0
        %1497 = vmatprep.mubr.f32.mxu0 0.0
        %1498 = vmatmul.mubr.f32.gmra.mrb[0].mxu0 %v1431
        %v1499 = vpop.f32.mrb[0].mxu0
        %v1500 = vadd.f32 0.0, %v1499
        %v1501 = vpop.f32.mrb[0].mxu0
        %v1502 = vadd.f32 0.0, %v1501
        %1503 = vdwg.mxu0
        %v1504 = vadd.f32 %v1414, %v1500
        %v1505 = vadd.f32 %v1416, %v1502
        %1506 = vrot.lane.b32.xlu0 %v1253, 112
        %v1507 = vpop.permute.xlu0 %1506
        %1508 = vrot.lane.b32.xlu0 %v1249, 112
        %v1509 = vpop.permute.xlu0 %1508
        %1510 = vrot.lane.b32.xlu0 %v1254, 112
        %v1511 = vpop.permute.xlu0 %1510
        %v1512 = vsel %vm642, %v1507, %v1509
        %v1513 = vsel %vm642, %v1509, %v1511
        %v1516 = vsel %vm362, %v1512, 0.0
        %v1517 = vsel %vm363, %v1513, 0.0
        %v1519 = vsel %vm1269, %v331, 0
        %1521 = vmatprep.subr.mxu0 %v1517
        %1522 = vmatpush1.msra.mxu0 %v1516
        %1523 = vmatprep.subr.mxu0 0.0
        %1524 = vmatpush1.msra.mxu0 0.0
        %1525 = vmatprep.subr.mxu0 0.0
        %1526 = vmatpush1.msra.mxu0 0.0
        %1527 = vmatprep.subr.mxu0 0.0
        %1528 = vmatpush1.msra.mxu0 0.0
        %1529 = vmatprep.subr.mxu0 0.0
        %1530 = vmatpush1.msra.mxu0 0.0
        %1531 = vmatprep.subr.mxu0 0.0
        %1532 = vmatpush1.msra.mxu0 0.0
        %1533 = vmatprep.subr.mxu0 0.0
        %1534 = vmatpush1.msra.mxu0 0.0
        %1535 = vmatprep.subr.mxu0 0.0
        %1536 = vmatpush1.msra.mxu0 0.0
        %1537 = vmatprep.subr.mxu0 0.0
        %1538 = vmatpush1.msra.mxu0 0.0
        %1539 = vmatprep.subr.mxu0 0.0
        %1540 = vmatpush1.msra.mxu0 0.0
        %1541 = vmatprep.subr.mxu0 0.0
        %1542 = vmatpush1.msra.mxu0 0.0
        %1543 = vmatprep.subr.mxu0 0.0
        %1544 = vmatpush1.msra.mxu0 0.0
        %1545 = vmatprep.subr.mxu0 0.0
        %1546 = vmatpush1.msra.mxu0 0.0
        %1547 = vmatprep.subr.mxu0 0.0
        %1548 = vmatpush1.msra.mxu0 0.0
        %1549 = vmatprep.subr.mxu0 0.0
        %1550 = vmatpush1.msra.mxu0 0.0
        %1551 = vmatprep.subr.mxu0 0.0
        %1552 = vmatpush1.msra.mxu0 0.0
        %1553 = vmatprep.subr.mxu0 0.0
        %1554 = vmatpush1.msra.mxu0 0.0
        %1555 = vmatprep.subr.mxu0 0.0
        %1556 = vmatpush1.msra.mxu0 0.0
        %1557 = vmatprep.subr.mxu0 0.0
        %1558 = vmatpush1.msra.mxu0 0.0
        %1559 = vmatprep.subr.mxu0 0.0
        %1560 = vmatpush1.msra.mxu0 0.0
        %1561 = vmatprep.subr.mxu0 0.0
        %1562 = vmatpush1.msra.mxu0 0.0
        %1563 = vmatprep.subr.mxu0 0.0
        %1564 = vmatpush1.msra.mxu0 0.0
        %1565 = vmatprep.subr.mxu0 0.0
        %1566 = vmatpush1.msra.mxu0 0.0
        %1567 = vmatprep.subr.mxu0 0.0
        %1568 = vmatpush1.msra.mxu0 0.0
        %1569 = vmatprep.subr.mxu0 0.0
        %1570 = vmatpush1.msra.mxu0 0.0
        %1571 = vmatprep.subr.mxu0 0.0
        %1572 = vmatpush1.msra.mxu0 0.0
        %1573 = vmatprep.subr.mxu0 0.0
        %1574 = vmatpush1.msra.mxu0 0.0
        %1575 = vmatprep.subr.mxu0 0.0
        %1576 = vmatpush1.msra.mxu0 0.0
        %1577 = vmatprep.subr.mxu0 0.0
        %1578 = vmatpush1.msra.mxu0 0.0
        %1579 = vmatprep.subr.mxu0 0.0
        %1580 = vmatpush1.msra.mxu0 0.0
        %1581 = vmatprep.subr.mxu0 0.0
        %1582 = vmatpush1.msra.mxu0 0.0
        %1583 = vmatprep.subr.mxu0 0.0
        %1584 = vmatpush1.msra.mxu0 0.0
        %1585 = vmatprep.mubr.f32.mxu0 0.0
        %1586 = vmatmul.mubr.f32.gmra.mrb[0].mxu0 %v1519
        %v1587 = vpop.f32.mrb[0].mxu0
        %v1588 = vadd.f32 0.0, %v1587
        %v1589 = vpop.f32.mrb[0].mxu0
        %v1590 = vadd.f32 0.0, %v1589
        %1591 = vdwg.mxu0
        %v1592 = vadd.f32 %v1504, %v1588
        %v1593 = vadd.f32 %v1505, %v1590
        %v1595 = vsel %vm1269, %v333, 0
        %1597 = vmatprep.subr.mxu0 %v1242
        %1598 = vmatpush1.msra.mxu0 %v1241
        %1599 = vmatprep.subr.mxu0 0.0
        %1600 = vmatpush1.msra.mxu0 0.0
        %1601 = vmatprep.subr.mxu0 0.0
        %1602 = vmatpush1.msra.mxu0 0.0
        %1603 = vmatprep.subr.mxu0 0.0
        %1604 = vmatpush1.msra.mxu0 0.0
        %1605 = vmatprep.subr.mxu0 0.0
        %1606 = vmatpush1.msra.mxu0 0.0
        %1607 = vmatprep.subr.mxu0 0.0
        %1608 = vmatpush1.msra.mxu0 0.0
        %1609 = vmatprep.subr.mxu0 0.0
        %1610 = vmatpush1.msra.mxu0 0.0
        %1611 = vmatprep.subr.mxu0 0.0
        %1612 = vmatpush1.msra.mxu0 0.0
        %1613 = vmatprep.subr.mxu0 0.0
        %1614 = vmatpush1.msra.mxu0 0.0
        %1615 = vmatprep.subr.mxu0 0.0
        %1616 = vmatpush1.msra.mxu0 0.0
        %1617 = vmatprep.subr.mxu0 0.0
        %1618 = vmatpush1.msra.mxu0 0.0
        %1619 = vmatprep.subr.mxu0 0.0
        %1620 = vmatpush1.msra.mxu0 0.0
        %1621 = vmatprep.subr.mxu0 0.0
        %1622 = vmatpush1.msra.mxu0 0.0
        %1623 = vmatprep.subr.mxu0 0.0
        %1624 = vmatpush1.msra.mxu0 0.0
        %1625 = vmatprep.subr.mxu0 0.0
        %1626 = vmatpush1.msra.mxu0 0.0
        %1627 = vmatprep.subr.mxu0 0.0
        %1628 = vmatpush1.msra.mxu0 0.0
        %1629 = vmatprep.subr.mxu0 0.0
        %1630 = vmatpush1.msra.mxu0 0.0
        %1631 = vmatprep.subr.mxu0 0.0
        %1632 = vmatpush1.msra.mxu0 0.0
        %1633 = vmatprep.subr.mxu0 0.0
        %1634 = vmatpush1.msra.mxu0 0.0
        %1635 = vmatprep.subr.mxu0 0.0
        %1636 = vmatpush1.msra.mxu0 0.0
        %1637 = vmatprep.subr.mxu0 0.0
        %1638 = vmatpush1.msra.mxu0 0.0
        %1639 = vmatprep.subr.mxu0 0.0
        %1640 = vmatpush1.msra.mxu0 0.0
        %1641 = vmatprep.subr.mxu0 0.0
        %1642 = vmatpush1.msra.mxu0 0.0
        %1643 = vmatprep.subr.mxu0 0.0
        %1644 = vmatpush1.msra.mxu0 0.0
        %1645 = vmatprep.subr.mxu0 0.0
        %1646 = vmatpush1.msra.mxu0 0.0
        %1647 = vmatprep.subr.mxu0 0.0
        %1648 = vmatpush1.msra.mxu0 0.0
        %1649 = vmatprep.subr.mxu0 0.0
        %1650 = vmatpush1.msra.mxu0 0.0
        %1651 = vmatprep.subr.mxu0 0.0
        %1652 = vmatpush1.msra.mxu0 0.0
        %1653 = vmatprep.subr.mxu0 0.0
        %1654 = vmatpush1.msra.mxu0 0.0
        %1655 = vmatprep.subr.mxu0 0.0
        %1656 = vmatpush1.msra.mxu0 0.0
        %1657 = vmatprep.subr.mxu0 0.0
        %1658 = vmatpush1.msra.mxu0 0.0
        %1659 = vmatprep.subr.mxu0 0.0
        %1660 = vmatpush1.msra.mxu0 0.0
        %1661 = vmatprep.mubr.f32.mxu0 0.0
        %1662 = vmatmul.mubr.f32.gmra.mrb[0].mxu0 %v1595
        %v1663 = vpop.f32.mrb[0].mxu0
        %v1664 = vadd.f32 0.0, %v1663
        %v1665 = vpop.f32.mrb[0].mxu0
        %v1666 = vadd.f32 0.0, %v1665
        %1667 = vdwg.mxu0
        %v1668 = vadd.f32 %v1592, %v1664
        %v1669 = vadd.f32 %v1593, %v1666
        %1670 = vrot.lane.b32.xlu0 %v1253, 110
        %v1671 = vpop.permute.xlu0 %1670
        %1672 = vrot.lane.b32.xlu0 %v1249, 110
        %v1673 = vpop.permute.xlu0 %1672
        %1674 = vrot.lane.b32.xlu0 %v1254, 110
        %v1675 = vpop.permute.xlu0 %1674
        %v1676 = vsel %vm817, %v1671, %v1673
        %v1677 = vsel %vm817, %v1673, %v1675
        %v1680 = vsel %vm539, %v1676, 0.0
        %v1681 = vsel %vm540, %v1677, 0.0
        %v1683 = vsel %vm1269, %v335, 0
        %1685 = vmatprep.subr.mxu0 %v1681
        %1686 = vmatpush1.msra.mxu0 %v1680
        %1687 = vmatprep.subr.mxu0 0.0
        %1688 = vmatpush1.msra.mxu0 0.0
        %1689 = vmatprep.subr.mxu0 0.0
        %1690 = vmatpush1.msra.mxu0 0.0
        %1691 = vmatprep.subr.mxu0 0.0
        %1692 = vmatpush1.msra.mxu0 0.0
        %1693 = vmatprep.subr.mxu0 0.0
        %1694 = vmatpush1.msra.mxu0 0.0
        %1695 = vmatprep.subr.mxu0 0.0
        %1696 = vmatpush1.msra.mxu0 0.0
        %1697 = vmatprep.subr.mxu0 0.0
        %1698 = vmatpush1.msra.mxu0 0.0
        %1699 = vmatprep.subr.mxu0 0.0
        %1700 = vmatpush1.msra.mxu0 0.0
        %1701 = vmatprep.subr.mxu0 0.0
        %1702 = vmatpush1.msra.mxu0 0.0
        %1703 = vmatprep.subr.mxu0 0.0
        %1704 = vmatpush1.msra.mxu0 0.0
        %1705 = vmatprep.subr.mxu0 0.0
        %1706 = vmatpush1.msra.mxu0 0.0
        %1707 = vmatprep.subr.mxu0 0.0
        %1708 = vmatpush1.msra.mxu0 0.0
        %1709 = vmatprep.subr.mxu0 0.0
        %1710 = vmatpush1.msra.mxu0 0.0
        %1711 = vmatprep.subr.mxu0 0.0
        %1712 = vmatpush1.msra.mxu0 0.0
        %1713 = vmatprep.subr.mxu0 0.0
        %1714 = vmatpush1.msra.mxu0 0.0
        %1715 = vmatprep.subr.mxu0 0.0
        %1716 = vmatpush1.msra.mxu0 0.0
        %1717 = vmatprep.subr.mxu0 0.0
        %1718 = vmatpush1.msra.mxu0 0.0
        %1719 = vmatprep.subr.mxu0 0.0
        %1720 = vmatpush1.msra.mxu0 0.0
        %1721 = vmatprep.subr.mxu0 0.0
        %1722 = vmatpush1.msra.mxu0 0.0
        %1723 = vmatprep.subr.mxu0 0.0
        %1724 = vmatpush1.msra.mxu0 0.0
        %1725 = vmatprep.subr.mxu0 0.0
        %1726 = vmatpush1.msra.mxu0 0.0
        %1727 = vmatprep.subr.mxu0 0.0
        %1728 = vmatpush1.msra.mxu0 0.0
        %1729 = vmatprep.subr.mxu0 0.0
        %1730 = vmatpush1.msra.mxu0 0.0
        %1731 = vmatprep.subr.mxu0 0.0
        %1732 = vmatpush1.msra.mxu0 0.0
        %1733 = vmatprep.subr.mxu0 0.0
        %1734 = vmatpush1.msra.mxu0 0.0
        %1735 = vmatprep.subr.mxu0 0.0
        %1736 = vmatpush1.msra.mxu0 0.0
        %1737 = vmatprep.subr.mxu0 0.0
        %1738 = vmatpush1.msra.mxu0 0.0
        %1739 = vmatprep.subr.mxu0 0.0
        %1740 = vmatpush1.msra.mxu0 0.0
        %1741 = vmatprep.subr.mxu0 0.0
        %1742 = vmatpush1.msra.mxu0 0.0
        %1743 = vmatprep.subr.mxu0 0.0
        %1744 = vmatpush1.msra.mxu0 0.0
        %1745 = vmatprep.subr.mxu0 0.0
        %1746 = vmatpush1.msra.mxu0 0.0
        %1747 = vmatprep.subr.mxu0 0.0
        %1748 = vmatpush1.msra.mxu0 0.0
        %1749 = vmatprep.mubr.f32.mxu0 0.0
        %1750 = vmatmul.mubr.f32.gmra.mrb[0].mxu0 %v1683
        %v1751 = vpop.f32.mrb[0].mxu0
        %v1752 = vadd.f32 0.0, %v1751
        %v1753 = vpop.f32.mrb[0].mxu0
        %v1754 = vadd.f32 0.0, %v1753
        %1755 = vdwg.mxu0
        %v1756 = vadd.f32 %v1668, %v1752
        %v1757 = vadd.f32 %v1669, %v1754
        %1758 = vrot.lane.b32.xlu0 %v1253, 96
        %v1759 = vpop.permute.xlu0 %1758
        %1760 = vrot.lane.b32.xlu0 %v1249, 96
        %v1761 = vpop.permute.xlu0 %1760
        %1762 = vrot.lane.b32.xlu0 %v1254, 96
        %v1763 = vpop.permute.xlu0 %1762
        %v1764 = vsel %vm912, %v1759, %v1761
        %v1765 = vsel %vm912, %v1761, %v1763
        %v1768 = vsel %vm362, %v1764, 0.0
        %v1769 = vsel %vm363, %v1765, 0.0
        %v1771 = vsel %vm1269, %v337, 0
        %1773 = vmatprep.subr.mxu0 %v1769
        %1774 = vmatpush1.msra.mxu0 %v1768
        %1775 = vmatprep.subr.mxu0 0.0
        %1776 = vmatpush1.msra.mxu0 0.0
        %1777 = vmatprep.subr.mxu0 0.0
        %1778 = vmatpush1.msra.mxu0 0.0
        %1779 = vmatprep.subr.mxu0 0.0
        %1780 = vmatpush1.msra.mxu0 0.0
        %1781 = vmatprep.subr.mxu0 0.0
        %1782 = vmatpush1.msra.mxu0 0.0
        %1783 = vmatprep.subr.mxu0 0.0
        %1784 = vmatpush1.msra.mxu0 0.0
        %1785 = vmatprep.subr.mxu0 0.0
        %1786 = vmatpush1.msra.mxu0 0.0
        %1787 = vmatprep.subr.mxu0 0.0
        %1788 = vmatpush1.msra.mxu0 0.0
        %1789 = vmatprep.subr.mxu0 0.0
        %1790 = vmatpush1.msra.mxu0 0.0
        %1791 = vmatprep.subr.mxu0 0.0
        %1792 = vmatpush1.msra.mxu0 0.0
        %1793 = vmatprep.subr.mxu0 0.0
        %1794 = vmatpush1.msra.mxu0 0.0
        %1795 = vmatprep.subr.mxu0 0.0
        %1796 = vmatpush1.msra.mxu0 0.0
        %1797 = vmatprep.subr.mxu0 0.0
        %1798 = vmatpush1.msra.mxu0 0.0
        %1799 = vmatprep.subr.mxu0 0.0
        %1800 = vmatpush1.msra.mxu0 0.0
        %1801 = vmatprep.subr.mxu0 0.0
        %1802 = vmatpush1.msra.mxu0 0.0
        %1803 = vmatprep.subr.mxu0 0.0
        %1804 = vmatpush1.msra.mxu0 0.0
        %1805 = vmatprep.subr.mxu0 0.0
        %1806 = vmatpush1.msra.mxu0 0.0
        %1807 = vmatprep.subr.mxu0 0.0
        %1808 = vmatpush1.msra.mxu0 0.0
        %1809 = vmatprep.subr.mxu0 0.0
        %1810 = vmatpush1.msra.mxu0 0.0
        %1811 = vmatprep.subr.mxu0 0.0
        %1812 = vmatpush1.msra.mxu0 0.0
        %1813 = vmatprep.subr.mxu0 0.0
        %1814 = vmatpush1.msra.mxu0 0.0
        %1815 = vmatprep.subr.mxu0 0.0
        %1816 = vmatpush1.msra.mxu0 0.0
        %1817 = vmatprep.subr.mxu0 0.0
        %1818 = vmatpush1.msra.mxu0 0.0
        %1819 = vmatprep.subr.mxu0 0.0
        %1820 = vmatpush1.msra.mxu0 0.0
        %1821 = vmatprep.subr.mxu0 0.0
        %1822 = vmatpush1.msra.mxu0 0.0
        %1823 = vmatprep.subr.mxu0 0.0
        %1824 = vmatpush1.msra.mxu0 0.0
        %1825 = vmatprep.subr.mxu0 0.0
        %1826 = vmatpush1.msra.mxu0 0.0
        %1827 = vmatprep.subr.mxu0 0.0
        %1828 = vmatpush1.msra.mxu0 0.0
        %1829 = vmatprep.subr.mxu0 0.0
        %1830 = vmatpush1.msra.mxu0 0.0
        %1831 = vmatprep.subr.mxu0 0.0
        %1832 = vmatpush1.msra.mxu0 0.0
        %1833 = vmatprep.subr.mxu0 0.0
        %1834 = vmatpush1.msra.mxu0 0.0
        %1835 = vmatprep.subr.mxu0 0.0
        %1836 = vmatpush1.msra.mxu0 0.0
        %1837 = vmatprep.mubr.f32.mxu0 0.0
        %1838 = vmatmul.mubr.f32.gmra.mrb[0].mxu0 %v1771
        %v1839 = vpop.f32.mrb[0].mxu0
        %v1840 = vadd.f32 0.0, %v1839
        %v1841 = vpop.f32.mrb[0].mxu0
        %v1842 = vadd.f32 0.0, %v1841
        %1843 = vdwg.mxu0
        %v1844 = vadd.f32 %v1756, %v1840
        %v1845 = vadd.f32 %v1757, %v1842
        %1846 = vrot.lane.b32.xlu0 %v1253, 95
        %v1847 = vpop.permute.xlu0 %1846
        %1848 = vrot.lane.b32.xlu0 %v1249, 95
        %v1849 = vpop.permute.xlu0 %1848
        %1850 = vrot.lane.b32.xlu0 %v1254, 95
        %v1851 = vpop.permute.xlu0 %1850
        %v1852 = vsel %vm1007, %v1847, %v1849
        %v1853 = vsel %vm1007, %v1849, %v1851
        %v1857 = vsel %vm1269, %v339, 0
        %1859 = vmatprep.subr.mxu0 %v1853
        %1860 = vmatpush1.msra.mxu0 %v1852
        %1861 = vmatprep.subr.mxu0 0.0
        %1862 = vmatpush1.msra.mxu0 0.0
        %1863 = vmatprep.subr.mxu0 0.0
        %1864 = vmatpush1.msra.mxu0 0.0
        %1865 = vmatprep.subr.mxu0 0.0
        %1866 = vmatpush1.msra.mxu0 0.0
        %1867 = vmatprep.subr.mxu0 0.0
        %1868 = vmatpush1.msra.mxu0 0.0
        %1869 = vmatprep.subr.mxu0 0.0
        %1870 = vmatpush1.msra.mxu0 0.0
        %1871 = vmatprep.subr.mxu0 0.0
        %1872 = vmatpush1.msra.mxu0 0.0
        %1873 = vmatprep.subr.mxu0 0.0
        %1874 = vmatpush1.msra.mxu0 0.0
        %1875 = vmatprep.subr.mxu0 0.0
        %1876 = vmatpush1.msra.mxu0 0.0
        %1877 = vmatprep.subr.mxu0 0.0
        %1878 = vmatpush1.msra.mxu0 0.0
        %1879 = vmatprep.subr.mxu0 0.0
        %1880 = vmatpush1.msra.mxu0 0.0
        %1881 = vmatprep.subr.mxu0 0.0
        %1882 = vmatpush1.msra.mxu0 0.0
        %1883 = vmatprep.subr.mxu0 0.0
        %1884 = vmatpush1.msra.mxu0 0.0
        %1885 = vmatprep.subr.mxu0 0.0
        %1886 = vmatpush1.msra.mxu0 0.0
        %1887 = vmatprep.subr.mxu0 0.0
        %1888 = vmatpush1.msra.mxu0 0.0
        %1889 = vmatprep.subr.mxu0 0.0
        %1890 = vmatpush1.msra.mxu0 0.0
        %1891 = vmatprep.subr.mxu0 0.0
        %1892 = vmatpush1.msra.mxu0 0.0
        %1893 = vmatprep.subr.mxu0 0.0
        %1894 = vmatpush1.msra.mxu0 0.0
        %1895 = vmatprep.subr.mxu0 0.0
        %1896 = vmatpush1.msra.mxu0 0.0
        %1897 = vmatprep.subr.mxu0 0.0
        %1898 = vmatpush1.msra.mxu0 0.0
        %1899 = vmatprep.subr.mxu0 0.0
        %1900 = vmatpush1.msra.mxu0 0.0
        %1901 = vmatprep.subr.mxu0 0.0
        %1902 = vmatpush1.msra.mxu0 0.0
        %1903 = vmatprep.subr.mxu0 0.0
        %1904 = vmatpush1.msra.mxu0 0.0
        %1905 = vmatprep.subr.mxu0 0.0
        %1906 = vmatpush1.msra.mxu0 0.0
        %1907 = vmatprep.subr.mxu0 0.0
        %1908 = vmatpush1.msra.mxu0 0.0
        %1909 = vmatprep.subr.mxu0 0.0
        %1910 = vmatpush1.msra.mxu0 0.0
        %1911 = vmatprep.subr.mxu0 0.0
        %1912 = vmatpush1.msra.mxu0 0.0
        %1913 = vmatprep.subr.mxu0 0.0
        %1914 = vmatpush1.msra.mxu0 0.0
        %1915 = vmatprep.subr.mxu0 0.0
        %1916 = vmatpush1.msra.mxu0 0.0
        %1917 = vmatprep.subr.mxu0 0.0
        %1918 = vmatpush1.msra.mxu0 0.0
        %1919 = vmatprep.subr.mxu0 0.0
        %1920 = vmatpush1.msra.mxu0 0.0
        %1921 = vmatprep.subr.mxu0 0.0
        %1922 = vmatpush1.msra.mxu0 0.0
        %1923 = vmatprep.mubr.f32.mxu0 0.0
        %1924 = vmatmul.mubr.f32.gmra.mrb[0].mxu0 %v1857
        %v1925 = vpop.f32.mrb[0].mxu0
        %v1926 = vadd.f32 0.0, %v1925
        %v1927 = vpop.f32.mrb[0].mxu0
        %v1928 = vadd.f32 0.0, %v1927
        %1929 = vdwg.mxu0
        %v1930 = vadd.f32 %v1844, %v1926
        %v1931 = vadd.f32 %v1845, %v1928
        %1932 = vrot.lane.b32.xlu0 %v1253, 94
        %v1933 = vpop.permute.xlu0 %1932
        %1934 = vrot.lane.b32.xlu0 %v1249, 94
        %v1935 = vpop.permute.xlu0 %1934
        %1936 = vrot.lane.b32.xlu0 %v1254, 94
        %v1937 = vpop.permute.xlu0 %1936
        %v1938 = vsel %vm1096, %v1933, %v1935
        %v1939 = vsel %vm1096, %v1935, %v1937
        %v1942 = vsel %vm539, %v1938, 0.0
        %v1943 = vsel %vm540, %v1939, 0.0
        %v1945 = vsel %vm1269, %v341, 0
        %1947 = vmatprep.subr.mxu0 %v1943
        %1948 = vmatpush1.msra.mxu0 %v1942
        %1949 = vmatprep.subr.mxu0 0.0
        %1950 = vmatpush1.msra.mxu0 0.0
        %1951 = vmatprep.subr.mxu0 0.0
        %1952 = vmatpush1.msra.mxu0 0.0
        %1953 = vmatprep.subr.mxu0 0.0
        %1954 = vmatpush1.msra.mxu0 0.0
        %1955 = vmatprep.subr.mxu0 0.0
        %1956 = vmatpush1.msra.mxu0 0.0
        %1957 = vmatprep.subr.mxu0 0.0
        %1958 = vmatpush1.msra.mxu0 0.0
        %1959 = vmatprep.subr.mxu0 0.0
        %1960 = vmatpush1.msra.mxu0 0.0
        %1961 = vmatprep.subr.mxu0 0.0
        %1962 = vmatpush1.msra.mxu0 0.0
        %1963 = vmatprep.subr.mxu0 0.0
        %1964 = vmatpush1.msra.mxu0 0.0
        %1965 = vmatprep.subr.mxu0 0.0
        %1966 = vmatpush1.msra.mxu0 0.0
        %1967 = vmatprep.subr.mxu0 0.0
        %1968 = vmatpush1.msra.mxu0 0.0
        %1969 = vmatprep.subr.mxu0 0.0
        %1970 = vmatpush1.msra.mxu0 0.0
        %1971 = vmatprep.subr.mxu0 0.0
        %1972 = vmatpush1.msra.mxu0 0.0
        %1973 = vmatprep.subr.mxu0 0.0
        %1974 = vmatpush1.msra.mxu0 0.0
        %1975 = vmatprep.subr.mxu0 0.0
        %1976 = vmatpush1.msra.mxu0 0.0
        %1977 = vmatprep.subr.mxu0 0.0
        %1978 = vmatpush1.msra.mxu0 0.0
        %1979 = vmatprep.subr.mxu0 0.0
        %1980 = vmatpush1.msra.mxu0 0.0
        %1981 = vmatprep.subr.mxu0 0.0
        %1982 = vmatpush1.msra.mxu0 0.0
        %1983 = vmatprep.subr.mxu0 0.0
        %1984 = vmatpush1.msra.mxu0 0.0
        %1985 = vmatprep.subr.mxu0 0.0
        %1986 = vmatpush1.msra.mxu0 0.0
        %1987 = vmatprep.subr.mxu0 0.0
        %1988 = vmatpush1.msra.mxu0 0.0
        %1989 = vmatprep.subr.mxu0 0.0
        %1990 = vmatpush1.msra.mxu0 0.0
        %1991 = vmatprep.subr.mxu0 0.0
        %1992 = vmatpush1.msra.mxu0 0.0
        %1993 = vmatprep.subr.mxu0 0.0
        %1994 = vmatpush1.msra.mxu0 0.0
        %1995 = vmatprep.subr.mxu0 0.0
        %1996 = vmatpush1.msra.mxu0 0.0
        %1997 = vmatprep.subr.mxu0 0.0
        %1998 = vmatpush1.msra.mxu0 0.0
        %1999 = vmatprep.subr.mxu0 0.0
        %2000 = vmatpush1.msra.mxu0 0.0
        %2001 = vmatprep.subr.mxu0 0.0
        %2002 = vmatpush1.msra.mxu0 0.0
        %2003 = vmatprep.subr.mxu0 0.0
        %2004 = vmatpush1.msra.mxu0 0.0
        %2005 = vmatprep.subr.mxu0 0.0
        %2006 = vmatpush1.msra.mxu0 0.0
        %2007 = vmatprep.subr.mxu0 0.0
        %2008 = vmatpush1.msra.mxu0 0.0
        %2009 = vmatprep.subr.mxu0 0.0
        %2010 = vmatpush1.msra.mxu0 0.0
        %2011 = vmatprep.mubr.f32.mxu0 0.0
        %2012 = vmatmul.mubr.f32.gmra.mrb[0].mxu0 %v1945
        %v2013 = vpop.f32.mrb[0].mxu0
        %v2014 = vadd.f32 0.0, %v2013
        %v2015 = vpop.f32.mrb[0].mxu0
        %v2016 = vadd.f32 0.0, %v2015
        %2017 = vdwg.mxu0
        %v2018 = vadd.f32 %v1930, %v2014
        %v2019 = vadd.f32 %v1931, %v2016
        %v2020 = vadd.f32 %v2018, %v2019
        %2021 = vadd.xlane.f32.xlu0 %v2020
        %v2022 = vpop.xlane.xlu0 %2021
        %v2023 = vrot.slane %v2022, 4
        %v2024 = vadd.f32 %v2022, %v2023
        %v2025 = vrot.slane %v2024, 2
        %v2026 = vadd.f32 %v2024, %v2025
        %v2027 = vrot.slane %v2026, 1
        %v2028 = vadd.f32 %v2026, %v2027
        %s2029 = vtos %v2028
        %s2030 = smul.f32 %s2029, 0.00048828125
        %v2031 = vstv %s2030
        %v2032 = vsub.f32 %v2018, %v2031
        %v2033 = vsub.f32 %v2019, %v2031
        %v2034 = vmul.f32 %v2032, %v2032
        %v2035 = vmul.f32 %v2033, %v2033
        %v2036 = vadd.f32 %v2034, %v2035
        %2037 = vadd.xlane.f32.xlu0 %v2036
        %v2038 = vpop.xlane.xlu0 %2037
        %v2039 = vrot.slane %v2038, 4
        %v2040 = vadd.f32 %v2038, %v2039
        %v2041 = vrot.slane %v2040, 2
        %v2042 = vadd.f32 %v2040, %v2041
        %v2043 = vrot.slane %v2042, 1
        %v2044 = vadd.f32 %v2042, %v2043
        %s2045 = vtos %v2044
        %s2046 = smul.f32 %s2045, 0.00048828125
        %s2047 = sadd.f32 %s2046, 1e-05
        %v2048 = vstv %s2047
        %v2049 = vrsqrt.pop %v2048
        %s2050 = vtos %v2049
        %v2051 = vstv %s2050
        %v2052 = vmul.f32 %v2032, %v2051
        %v2053 = vmul.f32 %v2033, %v2051
        %2055 = vset.pattern.permute.xlu0 0
        %2056 = vperm.xlu0 %2055, %v344
        %v2057 = vpop.permute.xlu0 %2056
        %v2059 = vmul.f32 %v2052, %v2057
        %v2060 = vmul.f32 %v2053, %v2057
        %2062 = vset.pattern.permute.xlu0 0
        %2063 = vperm.xlu0 %2062, %v345
        %v2064 = vpop.permute.xlu0 %2063
        %v2066 = vadd.f32 %v2059, %v2064
        %v2067 = vadd.f32 %v2060, %v2064
        %2068 = vst [vmem:[%s271] sm:$0xff] %v2066
        %2069 = vst [vmem:[%s271 + $0x8] sm:$0xff] %v2067
        %s2070 = sand.u32 %s181, 1
        %s2071 = scalar_lea.sflag [#allocation3], %s2070
        %s2072 = sand.u32 %s181, 1
        %s2073 = smul.addr %s2072, 16
        %s2074 = scalar_lea.vmem [#allocation2], %s2073
        // Predicated region
        $region49: #{tpu_custom_call.1} parent=47 // pred_check
          %p2075 = pneg %p191
        $region50: #{tpu_custom_call.1} parent=47 // pred_check_branch
          %2077 = sbr.rel (%p2075) target = $region52
        $region51: #{tpu_custom_call.1} parent=47 // pred_region
          %s2079 = ssub.s32 256, 256
          %2080 = vsyncadd %s2071, %s2079
          %s2081 = smul.addr %s21, 2
          %s2082 = smul.addr %s2081, 128
          %s2083 = scalar_lea.hbm %s7, %s2082
          %s2085 = sshll.u32 %s2074, 4
          %s2086 = int_to_ptr.vmem [resolvable:$true] %s2085
          %2088 = dma.vmem_to_hbm [thread:$0]  %s2086, 256, %s2083, %s2071
        $region52: #{tpu_custom_call.1} parent=47 // pred_fallthru
          _
      $region48: #{tpu_custom_call.1} parent=5 // pred_fallthru
        _
      %p2089 = scmp.le.s32.totalorder 2, %s16
      // Predicated region
      $region53: #{tpu_custom_call.1} parent=5 // pred_check
        %p2090 = pneg %p2089
      $region54: #{tpu_custom_call.1} parent=5 // pred_check_branch
        %2092 = sbr.rel (%p2090) target = $region56
      $region55: #{tpu_custom_call.1} parent=5 // pred_region
        %s2093 = ssub.s32 %s16, 2
        // Predicated region
        $region57: #{tpu_custom_call.1} parent=55 // pred_check
          %p2094 = pneg %p197
        $region58: #{tpu_custom_call.1} parent=55 // pred_check_branch
          %2096 = sbr.rel (%p2094) target = $region60
        $region59: #{tpu_custom_call.1} parent=55 // pred_region
          %s2097 = sand.u32 %s182, 1
          %s2098 = scalar_lea.sflag [#allocation3], %s2097
          %s2099 = sand.u32 %s182, 1
          %s2100 = smul.addr %s2099, 16
          %s2101 = scalar_lea.vmem [#allocation2], %s2100
          %2102 = dma.done %s2098, 256
        $region60: #{tpu_custom_call.1} parent=55 // pred_fallthru
          _
      $region56: #{tpu_custom_call.1} parent=5 // pred_fallthru
        _
    $region6: #{tpu_custom_call.1} parent=1 // loop_footer
      %s20 = sadd.s32 1, %s16
    $region7: #{tpu_custom_call.1} parent=1 // loop_footer_branch
      %15 = sbr.rel target = $region3
    $region8: #{tpu_custom_call.1} parent=1 // loop_exit
      _
    %2103 = vsyncpa [#allocation3], 1
    %s2104 = scalar_lea.sflag [#allocation3], 1
    %2105 = vsyncpa %s2104, 1

</llo_original>
